<compile_context>
chip_gen: v7x
topology: tpu7x:2x2x1
jax: 0.10.0
libtpu: 0.0.40
codegen_flags: <defaults>
</compile_context>

<pallas_src>
import functools

import jax
import jax.numpy as jnp
from jax.experimental import pallas as pl
from jax.experimental.pallas import tpu as pltpu

SELU_SCALE = 1.0507009873554805
SELU_ALPHA = 1.6732632423543772

LANE = 128      # TPU lane width (last-dim vreg extent)
SUBLANE = 8     # f32 sublane packing

_X_TILE_TARGET = 4 * 2**20      # preferred x bytes per pipeline buffer (~2-8 MiB)


def _round_up(x, m):
    return (x + m - 1) // m * m


def _cdiv(a, b):
    return (a + b - 1) // b


def _selu(v):
    # TODO(synk): switch to jnp.expm1 (better numerics near v~0) once an expm1
    # lowering is guaranteed in Mosaic; exp(v)-1 is known to lower cleanly.
    return SELU_SCALE * jnp.where(v > 0.0, v, SELU_ALPHA * (jnp.exp(v) - 1.0))


def _vmem_capacity_bytes():
    """Per-core VMEM capacity; conservative v7x-sized fallback if query fails."""
    try:
        cap = int(getattr(pltpu.get_tpu_info(), "vmem_capacity_bytes"))
        if cap > 0:
            return cap
    except Exception:
        pass
    return 64 * 2**20


def dan_kernel(x_ref, m_ref, *refs, seq_len, mxu_dtype):
    """refs = (w_0, b_0, ..., w_{L-1}, b_{L-1}, o_ref, acc_ref)."""
    acc_ref = refs[-1]          # (TB, D) f32 VMEM scratch (masked-sum accumulator)
    o_ref = refs[-2]            # (TB, D_pad) output tile
    wb_refs = refs[:-2]

    s_step = pl.program_id(1)

    @pl.when(s_step == 0)
    def _():
        acc_ref[...] = jnp.zeros_like(acc_ref)

    # Fused masked partial sum over this sequence tile.  The multiply against
    # the f32 mask promotes x (f32 or bf16) on the fly; accumulation is f32.
    m = m_ref[...].astype(jnp.float32)                               # (TB, TS)
    acc_ref[...] += jnp.sum(x_ref[...] * m[:, :, None], axis=1)      # (TB, D)

    @pl.when(s_step == pl.num_programs(1) - 1)
    def _():
        # NOTE: divides by S (not the mask count) -- exactly torch.mean's behavior.
        h = acc_ref[...] * (1.0 / seq_len)
        # Linear + SELU stack.  Weights were lane-padded in the wrapper; padded
        # lanes see 0 @ 0 + 0 -> SELU(0) = 0 through every layer.
        for li in range(0, len(wb_refs), 2):
            w_ref, b_ref = wb_refs[li], wb_refs[li + 1]
            z = jnp.dot(h.astype(mxu_dtype), w_ref[...],
                        preferred_element_type=jnp.float32) + b_ref[...]
            h = _selu(z)
        o_ref[...] = h.astype(o_ref.dtype)


def _choose_tiles(B, S, D, D_pad, n_layers, x_itemsize, m_itemsize, w_itemsize,
                  budget_bytes, weight_buffers):
    """Pick (TB, TS) batch/sequence tiles from a VMEM byte budget."""
    D_vmem = _round_up(D, LANE)                     # x / acc lane padding in VMEM
    tb_pref = 2 * LANE if D > LANE else LANE        # fill the 256-wide MXU when D is big

    # Resident weights + biases (single- or double-buffered).
    fixed = 0
    for li in range(n_layers):
        k_in = D if li == 0 else D_pad
        fixed += weight_buffers * (_round_up(k_in, SUBLANE) * D_pad * w_itemsize
                                   + SUBLANE * D_pad * 4)
    avail = budget_bytes - fixed

    def per_row(ts):            # VMEM bytes per batch row for sequence tile ts
        return (2 * _round_up(ts, SUBLANE) * D_vmem * x_itemsize    # x (dbl buf)
                + 2 * _round_up(ts, LANE) * m_itemsize              # mask (dbl buf)
                + 2 * D_pad * 4                                     # output (dbl buf)
                + D_vmem * 4)                                       # f32 accumulator

    def max_tb(ts):
        return max(SUBLANE, (avail // max(per_row(ts), 1)) // SUBLANE * SUBLANE)

    # Sequence tiling: only when a full-S x tile can't support an MXU-friendly TB.
    # TS must be a multiple of 128 (mask lane constraint) or equal to S.
    TS = S
    if S > LANE and max_tb(S) < tb_pref:
        ts = _X_TILE_TARGET // max(tb_pref * D_vmem * x_itemsize, 1)
        TS = int(min(_round_up(S, LANE), max(LANE, _round_up(int(ts), LANE))))

    # Batch tile: as big as the budget allows, capped by the larger of the MXU
    # preference and the ~8 MiB per-x-buffer sweet spot (per-step overhead vs VMEM).
    tb_sweet = (2 * _X_TILE_TARGET) // max(TS * D_vmem * x_itemsize, 1)
    tb_cap = max(tb_pref, int(tb_sweet) // SUBLANE * SUBLANE)
    TB = min(max_tb(TS), tb_cap, 2048)

    # Clamp to the batch; keep >= 2 batch grid steps when B allows so v7x's two
    # TensorCores both get work and the x DMA pipeline has steps to overlap.
    TB = min(TB, _round_up(B, SUBLANE))
    if B >= 2 * SUBLANE:
        TB = min(TB, _round_up(_cdiv(B, 2), SUBLANE))
    TB = max(SUBLANE, TB)
    return TB, TS


def dan_forward(inputs, mask, params, *, mxu_dtype=jnp.bfloat16,
                vmem_limit_bytes=None):
    """DAN forward.

    inputs: (B, S, D) float32 or bfloat16 (bf16 halves HBM traffic; the masked
      mean still accumulates in f32 in-kernel).
    mask:   (B, S) bool / int / float (kept narrow through the DMA).
    params: list of (W: (D, D) stored (in, out), b: (D,) or (1, D)).
    mxu_dtype: dtype fed to the MXU.  bf16 (default) for v6e/v7x throughput and
      half the resident weight VMEM; pass jnp.float32 for exact results.
    """
    inputs = jnp.asarray(inputs)
    mask = jnp.asarray(mask)
    if mask.dtype == jnp.bool_:
        # Keep the mask narrow through HBM->VMEM; it is cast to f32 in-kernel.
        mask = mask.astype(jnp.bfloat16)

    B, S, D = inputs.shape
    n_layers = len(params)
    # Fill the 256-wide v6e/v7x MXU for big D; don't blow up padding for small D.
    D_pad = _round_up(D, LANE) if D <= LANE else _round_up(D, 2 * LANE)

    # --- lane-pad weights (cast to the MXU operand dtype) / biases (f32).
    flat_wb = []
    for li, (w, b) in enumerate(params):
        k_in = D if li == 0 else D_pad
        w = jnp.asarray(w, mxu_dtype)
        wp = jnp.pad(w, ((0, k_in - w.shape[0]), (0, D_pad - w.shape[1])))
        bp = jnp.pad(jnp.asarray(b, jnp.float32).reshape(1, -1),
                     ((0, 0), (0, D_pad - D)))
        flat_wb += [wp, bp]

    # --- VMEM budget: ~75% of physical per-core VMEM (<=100 MiB), with 15%
    #     headroom for compiler internals.  v5e/v6e (128 MiB) -> 96 MiB limit;
    #     v7x (64 MiB) -> 48 MiB limit.  Raising the limit matters on v5e/v6e
    #     whose scoped defaults (16/32 MiB) would otherwise bind.
    if vmem_limit_bytes is None:
        vmem_limit_bytes = min(_vmem_capacity_bytes() * 3 // 4, 100 * 2**20)
    budget = int(vmem_limit_bytes) * 85 // 100
    w_itemsize = jnp.dtype(mxu_dtype).itemsize

    def build_and_run(weight_buffers):
        TB, TS = _choose_tiles(B, S, D, D_pad, n_layers,
                               inputs.dtype.itemsize, mask.dtype.itemsize,
                               w_itemsize, budget, weight_buffers)
        B_pad = _round_up(B, TB)
        S_pad = _round_up(S, TS)
        x, mk = inputs, mask
        if B_pad != B or S_pad != S:     # zero pad: contributes 0 to the masked sum
            x = jnp.pad(x, ((0, B_pad - B), (0, S_pad - S), (0, 0)))
            mk = jnp.pad(mk, ((0, B_pad - B), (0, S_pad - S)))
        grid = (B_pad // TB, S_pad // TS)

        in_specs = [
            pl.BlockSpec((TB, TS, D), lambda i, s: (i, s, 0)),   # x tile (pipelined)
            pl.BlockSpec((TB, TS), lambda i, s: (i, s)),         # mask tile (pipelined)
        ]
        # Resident weights/biases: constant index_map; single-buffer them so the
        # freed VMEM goes into a bigger TB.
        wb_kwargs = dict(pipeline_mode=pl.Buffered(1)) if weight_buffers == 1 else {}
        for li in range(n_layers):
            k_in = D if li == 0 else D_pad
            in_specs += [
                pl.BlockSpec((k_in, D_pad), lambda i, s: (0, 0), **wb_kwargs),
                pl.BlockSpec((1, D_pad), lambda i, s: (0, 0), **wb_kwargs),
            ]

        flops = B_pad * (2 * S_pad * D                       # masked reduction
                         + 2 * D * D_pad                     # first layer matmul
                         + 2 * (n_layers - 1) * D_pad * D_pad)
        bytes_accessed = (x.size * x.dtype.itemsize
                          + mk.size * mk.dtype.itemsize
                          + sum(a.size * a.dtype.itemsize for a in flat_wb)
                          + B_pad * D_pad * 4)

        kernel = functools.partial(dan_kernel, seq_len=S, mxu_dtype=mxu_dtype)
        out = pl.pallas_call(
            kernel,
            out_shape=jax.ShapeDtypeStruct((B_pad, D_pad), jnp.float32),
            grid=grid,
            in_specs=in_specs,
            out_specs=pl.BlockSpec((TB, D_pad), lambda i, s: (i, 0)),
            scratch_shapes=[pltpu.VMEM((TB, D), jnp.float32)],   # masked-sum acc
            compiler_params=pltpu.CompilerParams(
                dimension_semantics=("parallel", "arbitrary"),   # megacore on v7x
                vmem_limit_bytes=int(vmem_limit_bytes)),
            cost_estimate=pl.CostEstimate(
                flops=int(flops),
                transcendentals=int(n_layers * B_pad * D_pad),
                bytes_accessed=int(bytes_accessed)),
        )(x, mk, *flat_wb)
        return out[:B, :D]

    try:
        return build_and_run(1)          # single-buffered resident weights/biases
    except Exception:
        # Fallback for jax builds where pipeline_mode=pl.Buffered(1) isn't
        # accepted on pallas_call input specs; identical semantics, the weights
        # are just double-buffered (budget recomputed accordingly).
        return build_and_run(2)


def init_params(key, embedding_dim, n_layers=3):
    """Deterministic PyTorch-Linear-style uniform init. Weights stored (in, out)."""
    params = []
    bound = 1.0 / jnp.sqrt(embedding_dim)
    for _ in range(n_layers):
        kw, kb, key = jax.random.split(key, 3)
        w = jax.random.uniform(kw, (embedding_dim, embedding_dim),
                               jnp.float32, -bound, bound)
        b = jax.random.uniform(kb, (1, embedding_dim), jnp.float32, -bound, bound)
        params.append((w, b))
    return params


def dan_reference(inputs, mask, params):
    h = jnp.mean(inputs * mask[:, :, None], axis=-2)
    for w, b in params:
        h = _selu(h @ w + b)
    return h


if __name__ == "__main__":
    B, S, D = 2, 8, 32  # batch, sequence length, embedding_dim
    key = jax.random.PRNGKey(0)
    kx, km, kp = jax.random.split(key, 3)

    x = jax.random.normal(kx, (B, S, D), jnp.float32)
    mask_bool = jax.random.uniform(km, (B, S)) > 0.3          # bool mask
    params = init_params(kp, D, n_layers=3)

    ref = dan_reference(x, mask_bool.astype(jnp.float32), params)

    # Exact path: f32 operands into the MXU.
    out = jax.block_until_ready(dan_forward(x, mask_bool, params,
                                            mxu_dtype=jnp.float32))
    assert out.shape == (B, D)
    assert jnp.allclose(out, ref, atol=1e-5, rtol=1e-5), "f32 mismatch vs reference"

    # Reduced-precision path: bf16 inputs through HBM + bf16 MXU operands
    # (f32 accumulation / bias / SELU) — documented accuracy/perf trade-off.
    out_bf16 = jax.block_until_ready(dan_forward(x.astype(jnp.bfloat16),
                                                 mask_bool, params))
    assert out_bf16.shape == (B, D)
    assert jnp.allclose(out_bf16, ref, atol=5e-2, rtol=5e-2), "bf16 path diverged"

    print("KERNEL_OK")
</pallas_src>

<mosaic_0001>
module attributes {stable_mosaic.version = 11 : i64} {
  func.func @dan_kernel(%arg0: i32, %arg1: i32, %arg2: memref<8x8x32xf32, #tpu.memory_space<vmem>>, %arg3: memref<8x8xbf16, #tpu.memory_space<vmem>>, %arg4: memref<32x128xf32, #tpu.memory_space<vmem>>, %arg5: memref<1x128xf32, #tpu.memory_space<vmem>>, %arg6: memref<128x128xf32, #tpu.memory_space<vmem>>, %arg7: memref<1x128xf32, #tpu.memory_space<vmem>>, %arg8: memref<128x128xf32, #tpu.memory_space<vmem>>, %arg9: memref<1x128xf32, #tpu.memory_space<vmem>>, %arg10: memref<8x128xf32, #tpu.memory_space<vmem>>, %arg11: memref<8x32xf32, #tpu.memory_space<vmem>>) attributes {dimension_semantics = [#tpu.dimension_semantics<parallel>, #tpu.dimension_semantics<arbitrary>], iteration_bounds = array<i64: 1, 1>, scalar_prefetch = 0 : i64, scratch_operands = 1 : i64, tpu.core_type = #tpu.core_type<tc>, window_params = [{transform_indices = @transform_0, window_bounds = array<i64: 8, 8, 32>}, {transform_indices = @transform_1, window_bounds = array<i64: 8, 8>}, {pipeline_mode = #tpu.pipeline_mode<synchronous>, transform_indices = @transform_2, window_bounds = array<i64: 32, 128>}, {pipeline_mode = #tpu.pipeline_mode<synchronous>, transform_indices = @transform_3, window_bounds = array<i64: 1, 128>}, {pipeline_mode = #tpu.pipeline_mode<synchronous>, transform_indices = @transform_4, window_bounds = array<i64: 128, 128>}, {pipeline_mode = #tpu.pipeline_mode<synchronous>, transform_indices = @transform_5, window_bounds = array<i64: 1, 128>}, {pipeline_mode = #tpu.pipeline_mode<synchronous>, transform_indices = @transform_6, window_bounds = array<i64: 128, 128>}, {pipeline_mode = #tpu.pipeline_mode<synchronous>, transform_indices = @transform_7, window_bounds = array<i64: 1, 128>}, {transform_indices = @transform_8, window_bounds = array<i64: 8, 128>}]} {
    %c0_i32 = arith.constant 0 : i32
    %0 = arith.cmpi eq, %arg1, %c0_i32 : i32
    %1 = arith.extui %0 : i1 to i32
    %c0_i32_0 = arith.constant 0 : i32
    %2 = arith.cmpi ne, %1, %c0_i32_0 : i32
    scf.if %2 {
      %cst_11 = arith.constant 0.000000e+00 : f32
      %16 = vector.broadcast %cst_11 : f32 to vector<8x32xf32>
      %c0_12 = arith.constant 0 : index
      %c0_13 = arith.constant 0 : index
      %17 = vector.load %arg11[%c0_12, %c0_13] : memref<8x32xf32, #tpu.memory_space<vmem>>, vector<8x32xf32>
      tpu.vector_store %arg11[%c0_12, %c0_13], %16 {strides = array<i32>} : memref<8x32xf32, #tpu.memory_space<vmem>>, vector<8x32xf32>,
    } else {
    }
    %c0 = arith.constant 0 : index
    %c0_1 = arith.constant 0 : index
    %3 = vector.load %arg3[%c0, %c0_1] : memref<8x8xbf16, #tpu.memory_space<vmem>>, vector<8x8xbf16>
    %4 = arith.extf %3 : vector<8x8xbf16> to vector<8x8xf32>
    %c0_2 = arith.constant 0 : index
    %c0_3 = arith.constant 0 : index
    %5 = vector.load %arg11[%c0_2, %c0_3] : memref<8x32xf32, #tpu.memory_space<vmem>>, vector<8x32xf32>
    %c0_4 = arith.constant 0 : index
    %c0_5 = arith.constant 0 : index
    %c0_6 = arith.constant 0 : index
    %6 = vector.load %arg2[%c0_4, %c0_5, %c0_6] : memref<8x8x32xf32, #tpu.memory_space<vmem>>, vector<8x8x32xf32>
    %7 = vector.shape_cast %4 : vector<8x8xf32> to vector<8x8x1xf32>
    %8 = vector.broadcast %7 : vector<8x8x1xf32> to vector<8x8x32xf32>
    %9 = arith.mulf %6, %8 : vector<8x8x32xf32>
    %cst = arith.constant dense<0.000000e+00> : vector<8x32xf32>
    %10 = vector.multi_reduction <add>, %9, %cst [1] : vector<8x8x32xf32> to vector<8x32xf32>
    %11 = arith.addf %5, %10 : vector<8x32xf32>
    %c0_7 = arith.constant 0 : index
    %c0_8 = arith.constant 0 : index
    %12 = vector.load %arg11[%c0_7, %c0_8] : memref<8x32xf32, #tpu.memory_space<vmem>>, vector<8x32xf32>
    tpu.vector_store %arg11[%c0_7, %c0_8], %11 {strides = array<i32>} : memref<8x32xf32, #tpu.memory_space<vmem>>, vector<8x32xf32>,
    %c0_i32_9 = arith.constant 0 : i32
    %13 = arith.cmpi eq, %arg1, %c0_i32_9 : i32
    %14 = arith.extui %13 : i1 to i32
    %c0_i32_10 = arith.constant 0 : i32
    %15 = arith.cmpi ne, %14, %c0_i32_10 : i32
    scf.if %15 {
      %c0_11 = arith.constant 0 : index
      %c0_12 = arith.constant 0 : index
      %16 = vector.load %arg11[%c0_11, %c0_12] : memref<8x32xf32, #tpu.memory_space<vmem>>, vector<8x32xf32>
      %cst_13 = arith.constant 1.250000e-01 : f32
      %17 = vector.broadcast %cst_13 : f32 to vector<8x32xf32>
      %18 = arith.mulf %16, %17 : vector<8x32xf32>
      %c0_14 = arith.constant 0 : index
      %c0_15 = arith.constant 0 : index
      %19 = vector.load %arg4[%c0_14, %c0_15] : memref<32x128xf32, #tpu.memory_space<vmem>>, vector<32x128xf32>
      %cst_16 = arith.constant dense<0.000000e+00> : vector<8x128xf32>
      %20 = tpu.matmul %18, %19, %cst_16 {dimension_numbers = #tpu.dot_dimension_numbers<[1], [0], [0], [1], [0, 0, 1, 1], [], []>} : vector<8x32xf32>, vector<32x128xf32>, vector<8x128xf32> -> vector<8x128xf32>
      %c0_17 = arith.constant 0 : index
      %c0_18 = arith.constant 0 : index
      %21 = vector.load %arg5[%c0_17, %c0_18] : memref<1x128xf32, #tpu.memory_space<vmem>>, vector<1x128xf32>
      %22 = vector.broadcast %21 : vector<1x128xf32> to vector<8x128xf32>
      %23 = arith.addf %20, %22 : vector<8x128xf32>
      %cst_19 = arith.constant 0.000000e+00 : f32
      %24 = vector.broadcast %cst_19 : f32 to vector<8x128xf32>
      %25 = arith.cmpf ogt, %23, %24 : vector<8x128xf32>
      %26 = math.exp %23 : vector<8x128xf32>
      %cst_20 = arith.constant 1.000000e+00 : f32
      %27 = vector.broadcast %cst_20 : f32 to vector<8x128xf32>
      %28 = arith.subf %26, %27 : vector<8x128xf32>
      %cst_21 = arith.constant 1.67326319 : f32
      %29 = vector.broadcast %cst_21 : f32 to vector<8x128xf32>
      %30 = arith.mulf %29, %28 : vector<8x128xf32>
      %31 = arith.select %25, %23, %30 : vector<8x128xi1>, vector<8x128xf32>
      %cst_22 = arith.constant 1.05070102 : f32
      %32 = vector.broadcast %cst_22 : f32 to vector<8x128xf32>
      %33 = arith.mulf %32, %31 : vector<8x128xf32>
      %c0_23 = arith.constant 0 : index
      %c0_24 = arith.constant 0 : index
      %34 = vector.load %arg6[%c0_23, %c0_24] : memref<128x128xf32, #tpu.memory_space<vmem>>, vector<128x128xf32>
      %cst_25 = arith.constant dense<0.000000e+00> : vector<8x128xf32>
      %35 = tpu.matmul %33, %34, %cst_25 {dimension_numbers = #tpu.dot_dimension_numbers<[1], [0], [0], [1], [0, 0, 1, 1], [], []>} : vector<8x128xf32>, vector<128x128xf32>, vector<8x128xf32> -> vector<8x128xf32>
      %c0_26 = arith.constant 0 : index
      %c0_27 = arith.constant 0 : index
      %36 = vector.load %arg7[%c0_26, %c0_27] : memref<1x128xf32, #tpu.memory_space<vmem>>, vector<1x128xf32>
      %37 = vector.broadcast %36 : vector<1x128xf32> to vector<8x128xf32>
      %38 = arith.addf %35, %37 : vector<8x128xf32>
      %cst_28 = arith.constant 0.000000e+00 : f32
      %39 = vector.broadcast %cst_28 : f32 to vector<8x128xf32>
      %40 = arith.cmpf ogt, %38, %39 : vector<8x128xf32>
      %41 = math.exp %38 : vector<8x128xf32>
      %cst_29 = arith.constant 1.000000e+00 : f32
      %42 = vector.broadcast %cst_29 : f32 to vector<8x128xf32>
      %43 = arith.subf %41, %42 : vector<8x128xf32>
      %cst_30 = arith.constant 1.67326319 : f32
      %44 = vector.broadcast %cst_30 : f32 to vector<8x128xf32>
      %45 = arith.mulf %44, %43 : vector<8x128xf32>
      %46 = arith.select %40, %38, %45 : vector<8x128xi1>, vector<8x128xf32>
      %cst_31 = arith.constant 1.05070102 : f32
      %47 = vector.broadcast %cst_31 : f32 to vector<8x128xf32>
      %48 = arith.mulf %47, %46 : vector<8x128xf32>
      %c0_32 = arith.constant 0 : index
      %c0_33 = arith.constant 0 : index
      %49 = vector.load %arg8[%c0_32, %c0_33] : memref<128x128xf32, #tpu.memory_space<vmem>>, vector<128x128xf32>
      %cst_34 = arith.constant dense<0.000000e+00> : vector<8x128xf32>
      %50 = tpu.matmul %48, %49, %cst_34 {dimension_numbers = #tpu.dot_dimension_numbers<[1], [0], [0], [1], [0, 0, 1, 1], [], []>} : vector<8x128xf32>, vector<128x128xf32>, vector<8x128xf32> -> vector<8x128xf32>
      %c0_35 = arith.constant 0 : index
      %c0_36 = arith.constant 0 : index
      %51 = vector.load %arg9[%c0_35, %c0_36] : memref<1x128xf32, #tpu.memory_space<vmem>>, vector<1x128xf32>
      %52 = vector.broadcast %51 : vector<1x128xf32> to vector<8x128xf32>
      %53 = arith.addf %50, %52 : vector<8x128xf32>
      %cst_37 = arith.constant 0.000000e+00 : f32
      %54 = vector.broadcast %cst_37 : f32 to vector<8x128xf32>
      %55 = arith.cmpf ogt, %53, %54 : vector<8x128xf32>
      %56 = math.exp %53 : vector<8x128xf32>
      %cst_38 = arith.constant 1.000000e+00 : f32
      %57 = vector.broadcast %cst_38 : f32 to vector<8x128xf32>
      %58 = arith.subf %56, %57 : vector<8x128xf32>
      %cst_39 = arith.constant 1.67326319 : f32
      %59 = vector.broadcast %cst_39 : f32 to vector<8x128xf32>
      %60 = arith.mulf %59, %58 : vector<8x128xf32>
      %61 = arith.select %55, %53, %60 : vector<8x128xi1>, vector<8x128xf32>
      %cst_40 = arith.constant 1.05070102 : f32
      %62 = vector.broadcast %cst_40 : f32 to vector<8x128xf32>
      %63 = arith.mulf %62, %61 : vector<8x128xf32>
      %c0_41 = arith.constant 0 : index
      %c0_42 = arith.constant 0 : index
      %64 = vector.load %arg10[%c0_41, %c0_42] : memref<8x128xf32, #tpu.memory_space<vmem>>, vector<8x128xf32>
      tpu.vector_store %arg10[%c0_41, %c0_42], %63 {strides = array<i32>} : memref<8x128xf32, #tpu.memory_space<vmem>>, vector<8x128xf32>,
    } else {
    }
    return
  }
  func.func @transform_0(%arg0: i32, %arg1: i32) -> (i32, i32, i32) {
    %c0_i32 = arith.constant 0 : i32
    %c0_i32_0 = arith.constant 0 : i32
    return %arg0, %arg1, %c0_i32 : i32, i32, i32
  }
  func.func @transform_1(%arg0: i32, %arg1: i32) -> (i32, i32) {
    %c0_i32 = arith.constant 0 : i32
    return %arg0, %arg1 : i32, i32
  }
  func.func @transform_2(%arg0: i32, %arg1: i32) -> (i32, i32) {
    %c0_i32 = arith.constant 0 : i32
    %c0_i32_0 = arith.constant 0 : i32
    %c0_i32_1 = arith.constant 0 : i32
    return %c0_i32, %c0_i32_0 : i32, i32
  }
  func.func @transform_3(%arg0: i32, %arg1: i32) -> (i32, i32) {
    %c0_i32 = arith.constant 0 : i32
    %c0_i32_0 = arith.constant 0 : i32
    %c0_i32_1 = arith.constant 0 : i32
    return %c0_i32, %c0_i32_0 : i32, i32
  }
  func.func @transform_4(%arg0: i32, %arg1: i32) -> (i32, i32) {
    %c0_i32 = arith.constant 0 : i32
    %c0_i32_0 = arith.constant 0 : i32
    %c0_i32_1 = arith.constant 0 : i32
    return %c0_i32, %c0_i32_0 : i32, i32
  }
  func.func @transform_5(%arg0: i32, %arg1: i32) -> (i32, i32) {
    %c0_i32 = arith.constant 0 : i32
    %c0_i32_0 = arith.constant 0 : i32
    %c0_i32_1 = arith.constant 0 : i32
    return %c0_i32, %c0_i32_0 : i32, i32
  }
  func.func @transform_6(%arg0: i32, %arg1: i32) -> (i32, i32) {
    %c0_i32 = arith.constant 0 : i32
    %c0_i32_0 = arith.constant 0 : i32
    %c0_i32_1 = arith.constant 0 : i32
    return %c0_i32, %c0_i32_0 : i32, i32
  }
  func.func @transform_7(%arg0: i32, %arg1: i32) -> (i32, i32) {
    %c0_i32 = arith.constant 0 : i32
    %c0_i32_0 = arith.constant 0 : i32
    %c0_i32_1 = arith.constant 0 : i32
    return %c0_i32, %c0_i32_0 : i32, i32
  }
  func.func @transform_8(%arg0: i32, %arg1: i32) -> (i32, i32) {
    %c0_i32 = arith.constant 0 : i32
    %c0_i32_0 = arith.constant 0 : i32
    return %arg0, %c0_i32 : i32, i32
  }
}

module attributes {stable_mosaic.version = 11 : i64} {
  func.func @dan_kernel(%arg0: i32, %arg1: i32, %arg2: memref<8x8x32xf32, #tpu.memory_space<vmem>>, %arg3: memref<8x8xbf16, #tpu.memory_space<vmem>>, %arg4: memref<32x128xf32, #tpu.memory_space<vmem>>, %arg5: memref<1x128xf32, #tpu.memory_space<vmem>>, %arg6: memref<128x128xf32, #tpu.memory_space<vmem>>, %arg7: memref<1x128xf32, #tpu.memory_space<vmem>>, %arg8: memref<128x128xf32, #tpu.memory_space<vmem>>, %arg9: memref<1x128xf32, #tpu.memory_space<vmem>>, %arg10: memref<8x128xf32, #tpu.memory_space<vmem>>, %arg11: memref<8x32xf32, #tpu.memory_space<vmem>>) attributes {dimension_semantics = [#tpu.dimension_semantics<parallel>, #tpu.dimension_semantics<arbitrary>], iteration_bounds = array<i64: 1, 1>, scalar_prefetch = 0 : i64, scratch_operands = 1 : i64, tpu.core_type = #tpu.core_type<tc>, window_params = [{transform_indices = @transform_0, window_bounds = array<i64: 8, 8, 32>}, {transform_indices = @transform_1, window_bounds = array<i64: 8, 8>}, {pipeline_mode = #tpu.pipeline_mode<synchronous>, transform_indices = @transform_2, window_bounds = array<i64: 32, 128>}, {pipeline_mode = #tpu.pipeline_mode<synchronous>, transform_indices = @transform_3, window_bounds = array<i64: 1, 128>}, {pipeline_mode = #tpu.pipeline_mode<synchronous>, transform_indices = @transform_4, window_bounds = array<i64: 128, 128>}, {pipeline_mode = #tpu.pipeline_mode<synchronous>, transform_indices = @transform_5, window_bounds = array<i64: 1, 128>}, {pipeline_mode = #tpu.pipeline_mode<synchronous>, transform_indices = @transform_6, window_bounds = array<i64: 128, 128>}, {pipeline_mode = #tpu.pipeline_mode<synchronous>, transform_indices = @transform_7, window_bounds = array<i64: 1, 128>}, {transform_indices = @transform_8, window_bounds = array<i64: 8, 128>}]} {
    %c0_i32 = arith.constant 0 : i32
    %0 = arith.cmpi eq, %arg1, %c0_i32 : i32
    %1 = arith.extui %0 : i1 to i32
    %c0_i32_0 = arith.constant 0 : i32
    %2 = arith.cmpi ne, %1, %c0_i32_0 : i32
    scf.if %2 {
      %cst_11 = arith.constant 0.000000e+00 : f32
      %16 = vector.broadcast %cst_11 : f32 to vector<8x32xf32>
      %c0_12 = arith.constant 0 : index
      %c0_13 = arith.constant 0 : index
      %17 = vector.load %arg11[%c0_12, %c0_13] : memref<8x32xf32, #tpu.memory_space<vmem>>, vector<8x32xf32>
      tpu.vector_store %arg11[%c0_12, %c0_13], %16 {strides = array<i32>} : memref<8x32xf32, #tpu.memory_space<vmem>>, vector<8x32xf32>,
    } else {
    }
    %c0 = arith.constant 0 : index
    %c0_1 = arith.constant 0 : index
    %3 = vector.load %arg3[%c0, %c0_1] : memref<8x8xbf16, #tpu.memory_space<vmem>>, vector<8x8xbf16>
    %4 = arith.extf %3 : vector<8x8xbf16> to vector<8x8xf32>
    %c0_2 = arith.constant 0 : index
    %c0_3 = arith.constant 0 : index
    %5 = vector.load %arg11[%c0_2, %c0_3] : memref<8x32xf32, #tpu.memory_space<vmem>>, vector<8x32xf32>
    %c0_4 = arith.constant 0 : index
    %c0_5 = arith.constant 0 : index
    %c0_6 = arith.constant 0 : index
    %6 = vector.load %arg2[%c0_4, %c0_5, %c0_6] : memref<8x8x32xf32, #tpu.memory_space<vmem>>, vector<8x8x32xf32>
    %7 = vector.shape_cast %4 : vector<8x8xf32> to vector<8x8x1xf32>
    %8 = vector.broadcast %7 : vector<8x8x1xf32> to vector<8x8x32xf32>
    %9 = arith.mulf %6, %8 : vector<8x8x32xf32>
    %cst = arith.constant dense<0.000000e+00> : vector<8x32xf32>
    %10 = vector.multi_reduction <add>, %9, %cst [1] : vector<8x8x32xf32> to vector<8x32xf32>
    %11 = arith.addf %5, %10 : vector<8x32xf32>
    %c0_7 = arith.constant 0 : index
    %c0_8 = arith.constant 0 : index
    %12 = vector.load %arg11[%c0_7, %c0_8] : memref<8x32xf32, #tpu.memory_space<vmem>>, vector<8x32xf32>
    tpu.vector_store %arg11[%c0_7, %c0_8], %11 {strides = array<i32>} : memref<8x32xf32, #tpu.memory_space<vmem>>, vector<8x32xf32>,
    %c0_i32_9 = arith.constant 0 : i32
    %13 = arith.cmpi eq, %arg1, %c0_i32_9 : i32
    %14 = arith.extui %13 : i1 to i32
    %c0_i32_10 = arith.constant 0 : i32
    %15 = arith.cmpi ne, %14, %c0_i32_10 : i32
    scf.if %15 {
      %c0_11 = arith.constant 0 : index
      %c0_12 = arith.constant 0 : index
      %16 = vector.load %arg11[%c0_11, %c0_12] : memref<8x32xf32, #tpu.memory_space<vmem>>, vector<8x32xf32>
      %cst_13 = arith.constant 1.250000e-01 : f32
      %17 = vector.broadcast %cst_13 : f32 to vector<8x32xf32>
      %18 = arith.mulf %16, %17 : vector<8x32xf32>
      %c0_14 = arith.constant 0 : index
      %c0_15 = arith.constant 0 : index
      %19 = vector.load %arg4[%c0_14, %c0_15] : memref<32x128xf32, #tpu.memory_space<vmem>>, vector<32x128xf32>
      %cst_16 = arith.constant dense<0.000000e+00> : vector<8x128xf32>
      %20 = tpu.matmul %18, %19, %cst_16 {dimension_numbers = #tpu.dot_dimension_numbers<[1], [0], [0], [1], [0, 0, 1, 1], [], []>} : vector<8x32xf32>, vector<32x128xf32>, vector<8x128xf32> -> vector<8x128xf32>
      %c0_17 = arith.constant 0 : index
      %c0_18 = arith.constant 0 : index
      %21 = vector.load %arg5[%c0_17, %c0_18] : memref<1x128xf32, #tpu.memory_space<vmem>>, vector<1x128xf32>
      %22 = vector.broadcast %21 : vector<1x128xf32> to vector<8x128xf32>
      %23 = arith.addf %20, %22 : vector<8x128xf32>
      %cst_19 = arith.constant 0.000000e+00 : f32
      %24 = vector.broadcast %cst_19 : f32 to vector<8x128xf32>
      %25 = arith.cmpf ogt, %23, %24 : vector<8x128xf32>
      %26 = math.exp %23 : vector<8x128xf32>
      %cst_20 = arith.constant 1.000000e+00 : f32
      %27 = vector.broadcast %cst_20 : f32 to vector<8x128xf32>
      %28 = arith.subf %26, %27 : vector<8x128xf32>
      %cst_21 = arith.constant 1.67326319 : f32
      %29 = vector.broadcast %cst_21 : f32 to vector<8x128xf32>
      %30 = arith.mulf %29, %28 : vector<8x128xf32>
      %31 = arith.select %25, %23, %30 : vector<8x128xi1>, vector<8x128xf32>
      %cst_22 = arith.constant 1.05070102 : f32
      %32 = vector.broadcast %cst_22 : f32 to vector<8x128xf32>
      %33 = arith.mulf %32, %31 : vector<8x128xf32>
      %c0_23 = arith.constant 0 : index
      %c0_24 = arith.constant 0 : index
      %34 = vector.load %arg6[%c0_23, %c0_24] : memref<128x128xf32, #tpu.memory_space<vmem>>, vector<128x128xf32>
      %cst_25 = arith.constant dense<0.000000e+00> : vector<8x128xf32>
      %35 = tpu.matmul %33, %34, %cst_25 {dimension_numbers = #tpu.dot_dimension_numbers<[1], [0], [0], [1], [0, 0, 1, 1], [], []>} : vector<8x128xf32>, vector<128x128xf32>, vector<8x128xf32> -> vector<8x128xf32>
      %c0_26 = arith.constant 0 : index
      %c0_27 = arith.constant 0 : index
      %36 = vector.load %arg7[%c0_26, %c0_27] : memref<1x128xf32, #tpu.memory_space<vmem>>, vector<1x128xf32>
      %37 = vector.broadcast %36 : vector<1x128xf32> to vector<8x128xf32>
      %38 = arith.addf %35, %37 : vector<8x128xf32>
      %cst_28 = arith.constant 0.000000e+00 : f32
      %39 = vector.broadcast %cst_28 : f32 to vector<8x128xf32>
      %40 = arith.cmpf ogt, %38, %39 : vector<8x128xf32>
      %41 = math.exp %38 : vector<8x128xf32>
      %cst_29 = arith.constant 1.000000e+00 : f32
      %42 = vector.broadcast %cst_29 : f32 to vector<8x128xf32>
      %43 = arith.subf %41, %42 : vector<8x128xf32>
      %cst_30 = arith.constant 1.67326319 : f32
      %44 = vector.broadcast %cst_30 : f32 to vector<8x128xf32>
      %45 = arith.mulf %44, %43 : vector<8x128xf32>
      %46 = arith.select %40, %38, %45 : vector<8x128xi1>, vector<8x128xf32>
      %cst_31 = arith.constant 1.05070102 : f32
      %47 = vector.broadcast %cst_31 : f32 to vector<8x128xf32>
      %48 = arith.mulf %47, %46 : vector<8x128xf32>
      %c0_32 = arith.constant 0 : index
      %c0_33 = arith.constant 0 : index
      %49 = vector.load %arg8[%c0_32, %c0_33] : memref<128x128xf32, #tpu.memory_space<vmem>>, vector<128x128xf32>
      %cst_34 = arith.constant dense<0.000000e+00> : vector<8x128xf32>
      %50 = tpu.matmul %48, %49, %cst_34 {dimension_numbers = #tpu.dot_dimension_numbers<[1], [0], [0], [1], [0, 0, 1, 1], [], []>} : vector<8x128xf32>, vector<128x128xf32>, vector<8x128xf32> -> vector<8x128xf32>
      %c0_35 = arith.constant 0 : index
      %c0_36 = arith.constant 0 : index
      %51 = vector.load %arg9[%c0_35, %c0_36] : memref<1x128xf32, #tpu.memory_space<vmem>>, vector<1x128xf32>
      %52 = vector.broadcast %51 : vector<1x128xf32> to vector<8x128xf32>
      %53 = arith.addf %50, %52 : vector<8x128xf32>
      %cst_37 = arith.constant 0.000000e+00 : f32
      %54 = vector.broadcast %cst_37 : f32 to vector<8x128xf32>
      %55 = arith.cmpf ogt, %53, %54 : vector<8x128xf32>
      %56 = math.exp %53 : vector<8x128xf32>
      %cst_38 = arith.constant 1.000000e+00 : f32
      %57 = vector.broadcast %cst_38 : f32 to vector<8x128xf32>
      %58 = arith.subf %56, %57 : vector<8x128xf32>
      %cst_39 = arith.constant 1.67326319 : f32
      %59 = vector.broadcast %cst_39 : f32 to vector<8x128xf32>
      %60 = arith.mulf %59, %58 : vector<8x128xf32>
      %61 = arith.select %55, %53, %60 : vector<8x128xi1>, vector<8x128xf32>
      %cst_40 = arith.constant 1.05070102 : f32
      %62 = vector.broadcast %cst_40 : f32 to vector<8x128xf32>
      %63 = arith.mulf %62, %61 : vector<8x128xf32>
      %c0_41 = arith.constant 0 : index
      %c0_42 = arith.constant 0 : index
      %64 = vector.load %arg10[%c0_41, %c0_42] : memref<8x128xf32, #tpu.memory_space<vmem>>, vector<8x128xf32>
      tpu.vector_store %arg10[%c0_41, %c0_42], %63 {strides = array<i32>} : memref<8x128xf32, #tpu.memory_space<vmem>>, vector<8x128xf32>,
    } else {
    }
    return
  }
  func.func @transform_0(%arg0: i32, %arg1: i32) -> (i32, i32, i32) {
    %c0_i32 = arith.constant 0 : i32
    %c0_i32_0 = arith.constant 0 : i32
    return %arg0, %arg1, %c0_i32 : i32, i32, i32
  }
  func.func @transform_1(%arg0: i32, %arg1: i32) -> (i32, i32) {
    %c0_i32 = arith.constant 0 : i32
    return %arg0, %arg1 : i32, i32
  }
  func.func @transform_2(%arg0: i32, %arg1: i32) -> (i32, i32) {
    %c0_i32 = arith.constant 0 : i32
    %c0_i32_0 = arith.constant 0 : i32
    %c0_i32_1 = arith.constant 0 : i32
    return %c0_i32, %c0_i32_0 : i32, i32
  }
  func.func @transform_3(%arg0: i32, %arg1: i32) -> (i32, i32) {
    %c0_i32 = arith.constant 0 : i32
    %c0_i32_0 = arith.constant 0 : i32
    %c0_i32_1 = arith.constant 0 : i32
    return %c0_i32, %c0_i32_0 : i32, i32
  }
  func.func @transform_4(%arg0: i32, %arg1: i32) -> (i32, i32) {
    %c0_i32 = arith.constant 0 : i32
    %c0_i32_0 = arith.constant 0 : i32
    %c0_i32_1 = arith.constant 0 : i32
    return %c0_i32, %c0_i32_0 : i32, i32
  }
  func.func @transform_5(%arg0: i32, %arg1: i32) -> (i32, i32) {
    %c0_i32 = arith.constant 0 : i32
    %c0_i32_0 = arith.constant 0 : i32
    %c0_i32_1 = arith.constant 0 : i32
    return %c0_i32, %c0_i32_0 : i32, i32
  }
  func.func @transform_6(%arg0: i32, %arg1: i32) -> (i32, i32) {
    %c0_i32 = arith.constant 0 : i32
    %c0_i32_0 = arith.constant 0 : i32
    %c0_i32_1 = arith.constant 0 : i32
    return %c0_i32, %c0_i32_0 : i32, i32
  }
  func.func @transform_7(%arg0: i32, %arg1: i32) -> (i32, i32) {
    %c0_i32 = arith.constant 0 : i32
    %c0_i32_0 = arith.constant 0 : i32
    %c0_i32_1 = arith.constant 0 : i32
    return %c0_i32, %c0_i32_0 : i32, i32
  }
  func.func @transform_8(%arg0: i32, %arg1: i32) -> (i32, i32) {
    %c0_i32 = arith.constant 0 : i32
    %c0_i32_0 = arith.constant 0 : i32
    return %arg0, %c0_i32 : i32, i32
  }
}

</mosaic_0001>

<llo_original>
// kernel: tpu_custom_call.1
$region0: #{tpu_custom_call.1}
  #allocation0 [shape = 'u32[]', space=smem, size = 0x4, offset = 0x4, fixed_abs, tag = 'smem constant byte address 0x4 - core index']
  #allocation1 [shape = 'u32[144,128]{1,0:T(1,128)}', space=vmem, size = 0x12000, scoped, tag = 'internal scratch']
  #allocation2 [shape = 'f32[8,32]{1,0:T(8,128)}', space=vmem, size = 0x1000, scoped, tag = 'scratch operand']
  %s0 = inlined_call_operand.hbm [shape: f32[8,8,32], index: 0, kind: input, shape index: {}]
  %s1 = inlined_call_operand.hbm [shape: bf16[8,8], index: 1, kind: input, shape index: {}]
  %s2 = inlined_call_operand.hbm [shape: f32[32,128], index: 2, kind: input, shape index: {}]
  %s3 = inlined_call_operand.vmem [shape: f32[1,128], index: 3, kind: input, shape index: {}]
  %s4 = inlined_call_operand.hbm [shape: f32[128,128], index: 4, kind: input, shape index: {}]
  %s5 = inlined_call_operand.vmem [shape: f32[1,128], index: 5, kind: input, shape index: {}]
  %s6 = inlined_call_operand.hbm [shape: f32[128,128], index: 6, kind: input, shape index: {}]
  %s7 = inlined_call_operand.vmem [shape: f32[1,128], index: 7, kind: input, shape index: {}]
  %s8 = inlined_call_operand.hbm [shape: f32[8,128], index: 8, kind: output, shape index: {}]
  %s9 = sld [smem:[#allocation0]]
  $region70: #{tpu_custom_call.1} parent=0
    _
  %s11 = ssub.s32 1, %s9
  %s12 = scalar_select 0, %s11, %s9
  $region1: #{tpu_custom_call.1} parent=0
    #allocation3 [shape = 'u8[32768]{0}', space=vmem, size = 0x8000, scoped, tag = 'input window, operand 0, single buffered']
    #allocation4 [shape = 's32[1]{0}', space=sflag, size = 0x4, scoped, tag = 'scoped memory for tpu_custom_call.1']
    #allocation5 [shape = 's32[1]{0}', space=sflag, size = 0x4, scoped, tag = 'scoped memory for tpu_custom_call.1']
    #allocation6 [shape = 'u8[2048]{0}', space=vmem, size = 0x800, scoped, tag = 'input window, operand 1, single buffered']
    #allocation7 [shape = 's32[1]{0}', space=sflag, size = 0x4, scoped, tag = 'scoped memory for tpu_custom_call.1']
    #allocation8 [shape = 'u8[16384]{0}', space=vmem, size = 0x4000, scoped, tag = 'input window, operand 2, single buffered']
    #allocation9 [shape = 'u8[65536]{0}', space=vmem, size = 0x10000, scoped, tag = 'input window, operand 4, single buffered']
    #allocation10 [shape = 's32[1]{0}', space=sflag, size = 0x4, scoped, tag = 'scoped memory for tpu_custom_call.1']
    #allocation11 [shape = 'u8[65536]{0}', space=vmem, size = 0x10000, scoped, tag = 'input window, operand 6, single buffered']
    #allocation12 [shape = 'u8[4096]{0}', space=vmem, size = 0x1000, scoped, tag = 'output window, operand 0, single buffered']
    %13 = vsyncpa [#allocation4], 0
    %14 = vsyncpa [#allocation7], 0
    %15 = vsyncpa [#allocation10], 0
    %16 = vsyncpa [#allocation5], 0
    // Predicated region
    $region2: #{tpu_custom_call.1} parent=1 // pred_check
      _
    $region3: #{tpu_custom_call.1} parent=1 // pred_check_branch
      %18 = sbr.rel (0) target = $region5
    $region4: #{tpu_custom_call.1} parent=1 // pred_region
      %s20 = ssub.s32 1024, 1024
      %21 = vsyncadd [#allocation4], %s20
      %s22 = sshll.u32 [#allocation3], 4
      %s23 = int_to_ptr.vmem [resolvable:$true] %s22
      %28 = dma.hbm_to_vmem [thread:$0]  %s0, 1024, %s23, [#allocation4], 128, 128, 8
    $region5: #{tpu_custom_call.1} parent=1 // pred_fallthru
      _
    // Predicated region
    $region6: #{tpu_custom_call.1} parent=1 // pred_check
      _
    $region7: #{tpu_custom_call.1} parent=1 // pred_check_branch
      %30 = sbr.rel (0) target = $region9
    $region8: #{tpu_custom_call.1} parent=1 // pred_region
      %s32 = ssub.s32 64, 64
      %33 = vsyncadd [#allocation7], %s32
      %s35 = sshll.u32 [#allocation6], 4
      %s36 = int_to_ptr.vmem [resolvable:$true] %s35
      %38 = dma.hbm_to_vmem [thread:$0]  %s1, 64, %s36, [#allocation7]
    $region9: #{tpu_custom_call.1} parent=1 // pred_fallthru
      _
    // Predicated region
    $region10: #{tpu_custom_call.1} parent=1 // pred_check
      _
    $region11: #{tpu_custom_call.1} parent=1 // pred_check_branch
      %40 = sbr.rel (0) target = $region13
    $region12: #{tpu_custom_call.1} parent=1 // pred_region
      %s42 = ssub.s32 512, 512
      %43 = vsyncadd [#allocation7], %s42
      %s44 = sshll.u32 [#allocation8], 4
      %s45 = int_to_ptr.vmem [resolvable:$true] %s44
      %50 = dma.hbm_to_vmem [thread:$0]  %s2, 512, %s45, [#allocation7], 128, 128, 8
    $region13: #{tpu_custom_call.1} parent=1 // pred_fallthru
      _
    // Predicated region
    $region14: #{tpu_custom_call.1} parent=1 // pred_check
      _
    $region15: #{tpu_custom_call.1} parent=1 // pred_check_branch
      %52 = sbr.rel (0) target = $region17
    $region16: #{tpu_custom_call.1} parent=1 // pred_region
      _
    $region17: #{tpu_custom_call.1} parent=1 // pred_fallthru
      _
    // Predicated region
    $region18: #{tpu_custom_call.1} parent=1 // pred_check
      _
    $region19: #{tpu_custom_call.1} parent=1 // pred_check_branch
      %54 = sbr.rel (0) target = $region21
    $region20: #{tpu_custom_call.1} parent=1 // pred_region
      %s56 = ssub.s32 2048, 2048
      %57 = vsyncadd [#allocation10], %s56
      %s58 = sshll.u32 [#allocation9], 4
      %s59 = int_to_ptr.vmem [resolvable:$true] %s58
      %64 = dma.hbm_to_vmem [thread:$0]  %s4, 2048, %s59, [#allocation10], 128, 128, 8
    $region21: #{tpu_custom_call.1} parent=1 // pred_fallthru
      _
    // Predicated region
    $region22: #{tpu_custom_call.1} parent=1 // pred_check
      _
    $region23: #{tpu_custom_call.1} parent=1 // pred_check_branch
      %66 = sbr.rel (0) target = $region25
    $region24: #{tpu_custom_call.1} parent=1 // pred_region
      _
    $region25: #{tpu_custom_call.1} parent=1 // pred_fallthru
      _
    // Predicated region
    $region26: #{tpu_custom_call.1} parent=1 // pred_check
      _
    $region27: #{tpu_custom_call.1} parent=1 // pred_check_branch
      %68 = sbr.rel (0) target = $region29
    $region28: #{tpu_custom_call.1} parent=1 // pred_region
      %s70 = ssub.s32 2048, 2048
      %71 = vsyncadd [#allocation10], %s70
      %s72 = sshll.u32 [#allocation11], 4
      %s73 = int_to_ptr.vmem [resolvable:$true] %s72
      %78 = dma.hbm_to_vmem [thread:$0]  %s6, 2048, %s73, [#allocation10], 128, 128, 8
    $region29: #{tpu_custom_call.1} parent=1 // pred_fallthru
      _
    // Predicated region
    $region30: #{tpu_custom_call.1} parent=1 // pred_check
      _
    $region31: #{tpu_custom_call.1} parent=1 // pred_check_branch
      %80 = sbr.rel (0) target = $region33
    $region32: #{tpu_custom_call.1} parent=1 // pred_region
      _
    $region33: #{tpu_custom_call.1} parent=1 // pred_fallthru
      _
    // Predicated region
    $region34: #{tpu_custom_call.1} parent=1 // pred_check
      _
    $region35: #{tpu_custom_call.1} parent=1 // pred_check_branch
      %82 = sbr.rel (0) target = $region37
    $region36: #{tpu_custom_call.1} parent=1 // pred_region
      %83 = dma.done [#allocation4], 1024
    $region37: #{tpu_custom_call.1} parent=1 // pred_fallthru
      _
    // Predicated region
    $region38: #{tpu_custom_call.1} parent=1 // pred_check
      _
    $region39: #{tpu_custom_call.1} parent=1 // pred_check_branch
      %85 = sbr.rel (0) target = $region41
    $region40: #{tpu_custom_call.1} parent=1 // pred_region
      %86 = dma.done [#allocation7], 64
    $region41: #{tpu_custom_call.1} parent=1 // pred_fallthru
      _
    // Predicated region
    $region42: #{tpu_custom_call.1} parent=1 // pred_check
      _
    $region43: #{tpu_custom_call.1} parent=1 // pred_check_branch
      %88 = sbr.rel (0) target = $region45
    $region44: #{tpu_custom_call.1} parent=1 // pred_region
      %89 = dma.done [#allocation7], 512
    $region45: #{tpu_custom_call.1} parent=1 // pred_fallthru
      _
    // Predicated region
    $region46: #{tpu_custom_call.1} parent=1 // pred_check
      _
    $region47: #{tpu_custom_call.1} parent=1 // pred_check_branch
      %91 = sbr.rel (0) target = $region49
    $region48: #{tpu_custom_call.1} parent=1 // pred_region
      %92 = dma.done [#allocation10], 2048
    $region49: #{tpu_custom_call.1} parent=1 // pred_fallthru
      _
    // Predicated region
    $region50: #{tpu_custom_call.1} parent=1 // pred_check
      _
    $region51: #{tpu_custom_call.1} parent=1 // pred_check_branch
      %94 = sbr.rel (0) target = $region53
    $region52: #{tpu_custom_call.1} parent=1 // pred_region
      %95 = dma.done [#allocation10], 2048
    $region53: #{tpu_custom_call.1} parent=1 // pred_fallthru
      _
    %p96 = scmp.eq.s32.totalorder 0, 0
    // Predicated region
    $region54: #{tpu_custom_call.1} parent=1 // pred_check
      %p97 = pneg %p96
    $region55: #{tpu_custom_call.1} parent=1 // pred_check_branch
      %99 = sbr.rel (%p97) target = $region57
    $region56: #{tpu_custom_call.1} parent=1 // pred_region
      %vm100 = vcmask 261120
      %101 = vst.msk [vmem:[#allocation2] sm:$0xff] %vm100, 0.0
    $region57: #{tpu_custom_call.1} parent=1 // pred_fallthru
      _
    %v102 = vld [vmem:[#allocation6] sm:$0xf]
    %v103 = vunpack.c.l.bf16 %v102
    %v104 = vld [vmem:[#allocation2] sm:$0xff]
    %v105 = vld [vmem:[#allocation3] sm:$0xff]
    %v106 = vld [vmem:[#allocation3 + $0x8] sm:$0xff]
    %v107 = vld [vmem:[#allocation3 + $0x10] sm:$0xff]
    %v108 = vld [vmem:[#allocation3 + $0x18] sm:$0xff]
    %v109 = vld [vmem:[#allocation3 + $0x20] sm:$0xff]
    %v110 = vld [vmem:[#allocation3 + $0x28] sm:$0xff]
    %v111 = vld [vmem:[#allocation3 + $0x30] sm:$0xff]
    %v112 = vld [vmem:[#allocation3 + $0x38] sm:$0xff]
    %v113 = vlaneseq
    %v114 = vshrl.u32 %v113, 7
    %v115 = vsub.s32 0, %v114
    %v116 = vrot.slane %v103, %v115
    %118 = vbcast.lane.b32.xlu0 %v116, 256
    %v119 = vpop.permute.xlu0 %118
    %v120 = vlaneseq
    %v121 = vshrl.u32 %v120, 7
    %v122 = vsub.s32 1, %v121
    %v123 = vrot.slane %v103, %v122
    %125 = vbcast.lane.b32.xlu0 %v123, 256
    %v126 = vpop.permute.xlu0 %125
    %v127 = vlaneseq
    %v128 = vshrl.u32 %v127, 7
    %v129 = vsub.s32 2, %v128
    %v130 = vrot.slane %v103, %v129
    %132 = vbcast.lane.b32.xlu0 %v130, 256
    %v133 = vpop.permute.xlu0 %132
    %v134 = vlaneseq
    %v135 = vshrl.u32 %v134, 7
    %v136 = vsub.s32 3, %v135
    %v137 = vrot.slane %v103, %v136
    %139 = vbcast.lane.b32.xlu0 %v137, 256
    %v140 = vpop.permute.xlu0 %139
    %v141 = vlaneseq
    %v142 = vshrl.u32 %v141, 7
    %v143 = vsub.s32 4, %v142
    %v144 = vrot.slane %v103, %v143
    %146 = vbcast.lane.b32.xlu0 %v144, 256
    %v147 = vpop.permute.xlu0 %146
    %v148 = vlaneseq
    %v149 = vshrl.u32 %v148, 7
    %v150 = vsub.s32 5, %v149
    %v151 = vrot.slane %v103, %v150
    %153 = vbcast.lane.b32.xlu0 %v151, 256
    %v154 = vpop.permute.xlu0 %153
    %v155 = vlaneseq
    %v156 = vshrl.u32 %v155, 7
    %v157 = vsub.s32 6, %v156
    %v158 = vrot.slane %v103, %v157
    %160 = vbcast.lane.b32.xlu0 %v158, 256
    %v161 = vpop.permute.xlu0 %160
    %v162 = vlaneseq
    %v163 = vshrl.u32 %v162, 7
    %v164 = vsub.s32 7, %v163
    %v165 = vrot.slane %v103, %v164
    %167 = vbcast.lane.b32.xlu0 %v165, 256
    %v168 = vpop.permute.xlu0 %167
    %v169 = vmul.f32 %v105, %v119
    %v170 = vmul.f32 %v106, %v126
    %v171 = vmul.f32 %v107, %v133
    %v172 = vmul.f32 %v108, %v140
    %v173 = vmul.f32 %v109, %v147
    %v174 = vmul.f32 %v110, %v154
    %v175 = vmul.f32 %v111, %v161
    %v176 = vmul.f32 %v112, %v168
    %vm177 = vcmask 261120
    %v178 = vsel %vm177, %v169, 0.0
    %v179 = vrot.slane %v178, 4
    %v180 = vadd.f32 %v178, %v179
    %v181 = vrot.slane %v180, 2
    %v182 = vadd.f32 %v180, %v181
    %v183 = vrot.slane %v182, 1
    %v184 = vadd.f32 %v182, %v183
    %v185 = vsel %vm177, %v170, 0.0
    %v186 = vrot.slane %v185, 4
    %v187 = vadd.f32 %v185, %v186
    %v188 = vrot.slane %v187, 2
    %v189 = vadd.f32 %v187, %v188
    %v190 = vrot.slane %v189, 1
    %v191 = vadd.f32 %v189, %v190
    %v192 = vsel %vm177, %v171, 0.0
    %v193 = vrot.slane %v192, 4
    %v194 = vadd.f32 %v192, %v193
    %v195 = vrot.slane %v194, 2
    %v196 = vadd.f32 %v194, %v195
    %v197 = vrot.slane %v196, 1
    %v198 = vadd.f32 %v196, %v197
    %v199 = vsel %vm177, %v172, 0.0
    %v200 = vrot.slane %v199, 4
    %v201 = vadd.f32 %v199, %v200
    %v202 = vrot.slane %v201, 2
    %v203 = vadd.f32 %v201, %v202
    %v204 = vrot.slane %v203, 1
    %v205 = vadd.f32 %v203, %v204
    %v206 = vsel %vm177, %v173, 0.0
    %v207 = vrot.slane %v206, 4
    %v208 = vadd.f32 %v206, %v207
    %v209 = vrot.slane %v208, 2
    %v210 = vadd.f32 %v208, %v209
    %v211 = vrot.slane %v210, 1
    %v212 = vadd.f32 %v210, %v211
    %v213 = vsel %vm177, %v174, 0.0
    %v214 = vrot.slane %v213, 4
    %v215 = vadd.f32 %v213, %v214
    %v216 = vrot.slane %v215, 2
    %v217 = vadd.f32 %v215, %v216
    %v218 = vrot.slane %v217, 1
    %v219 = vadd.f32 %v217, %v218
    %v220 = vsel %vm177, %v175, 0.0
    %v221 = vrot.slane %v220, 4
    %v222 = vadd.f32 %v220, %v221
    %v223 = vrot.slane %v222, 2
    %v224 = vadd.f32 %v222, %v223
    %v225 = vrot.slane %v224, 1
    %v226 = vadd.f32 %v224, %v225
    %v227 = vsel %vm177, %v176, 0.0
    %v228 = vrot.slane %v227, 4
    %v229 = vadd.f32 %v227, %v228
    %v230 = vrot.slane %v229, 2
    %v231 = vadd.f32 %v229, %v230
    %v232 = vrot.slane %v231, 1
    %v233 = vadd.f32 %v231, %v232
    %vm242 = vcmask 1041409
    %v243 = vsel %vm242, %v191, %v184
    %vm244 = vcmask 1042434
    %v245 = vsel %vm244, %v198, %v243
    %vm246 = vcmask 1043459
    %v247 = vsel %vm246, %v205, %v245
    %vm248 = vcmask 1044484
    %v249 = vsel %vm248, %v212, %v247
    %vm250 = vcmask 1045509
    %v251 = vsel %vm250, %v219, %v249
    %vm252 = vcmask 1046534
    %v253 = vsel %vm252, %v226, %v251
    %vm254 = vcmask 1047559
    %v255 = vsel %vm254, %v233, %v253
    %v257 = vadd.f32 %v104, %v255
    %258 = vst.msk [vmem:[#allocation2] sm:$0xff] %vm177, %v257
    // Predicated region
    $region58: #{tpu_custom_call.1} parent=1 // pred_check
      %p259 = pneg %p96
    $region59: #{tpu_custom_call.1} parent=1 // pred_check_branch
      %261 = sbr.rel (%p259) target = $region61
    $region60: #{tpu_custom_call.1} parent=1 // pred_region
      %v262 = vld [vmem:[#allocation2] sm:$0xff]
      %v263 = vmul.f32 %v262, 0.125
      %v264 = vld [vmem:[#allocation8] sm:$0xff]
      %v265 = vld [vmem:[#allocation8 + $0x8] sm:$0xff]
      %v266 = vld [vmem:[#allocation8 + $0x10] sm:$0xff]
      %v267 = vld [vmem:[#allocation8 + $0x18] sm:$0xff]
      %v268 = vld [vmem:[%s3] sm:$0x1]
      %v270 = vlaneseq
      %v271 = vshrl.u32 %v270, 7
      %v272 = vsub.s32 0, %v271
      %v273 = vrot.slane %v268, %v272
      %v276 = vsel %vm177, %v263, 0
      %278 = vmatprep.subr.mxu0 0.0
      %279 = vmatpush1.msra.mxu0 %v264
      %280 = vmatprep.subr.mxu0 0.0
      %281 = vmatpush1.msra.mxu0 %v265
      %282 = vmatprep.subr.mxu0 0.0
      %283 = vmatpush1.msra.mxu0 %v266
      %284 = vmatprep.subr.mxu0 0.0
      %285 = vmatpush1.msra.mxu0 %v267
      %286 = vmatprep.subr.mxu0 0.0
      %287 = vmatpush1.msra.mxu0 0.0
      %288 = vmatprep.subr.mxu0 0.0
      %289 = vmatpush1.msra.mxu0 0.0
      %290 = vmatprep.subr.mxu0 0.0
      %291 = vmatpush1.msra.mxu0 0.0
      %292 = vmatprep.subr.mxu0 0.0
      %293 = vmatpush1.msra.mxu0 0.0
      %294 = vmatprep.subr.mxu0 0.0
      %295 = vmatpush1.msra.mxu0 0.0
      %296 = vmatprep.subr.mxu0 0.0
      %297 = vmatpush1.msra.mxu0 0.0
      %298 = vmatprep.subr.mxu0 0.0
      %299 = vmatpush1.msra.mxu0 0.0
      %300 = vmatprep.subr.mxu0 0.0
      %301 = vmatpush1.msra.mxu0 0.0
      %302 = vmatprep.subr.mxu0 0.0
      %303 = vmatpush1.msra.mxu0 0.0
      %304 = vmatprep.subr.mxu0 0.0
      %305 = vmatpush1.msra.mxu0 0.0
      %306 = vmatprep.subr.mxu0 0.0
      %307 = vmatpush1.msra.mxu0 0.0
      %308 = vmatprep.subr.mxu0 0.0
      %309 = vmatpush1.msra.mxu0 0.0
      %310 = vmatprep.subr.mxu0 0.0
      %311 = vmatpush1.msra.mxu0 0.0
      %312 = vmatprep.subr.mxu0 0.0
      %313 = vmatpush1.msra.mxu0 0.0
      %314 = vmatprep.subr.mxu0 0.0
      %315 = vmatpush1.msra.mxu0 0.0
      %316 = vmatprep.subr.mxu0 0.0
      %317 = vmatpush1.msra.mxu0 0.0
      %318 = vmatprep.subr.mxu0 0.0
      %319 = vmatpush1.msra.mxu0 0.0
      %320 = vmatprep.subr.mxu0 0.0
      %321 = vmatpush1.msra.mxu0 0.0
      %322 = vmatprep.subr.mxu0 0.0
      %323 = vmatpush1.msra.mxu0 0.0
      %324 = vmatprep.subr.mxu0 0.0
      %325 = vmatpush1.msra.mxu0 0.0
      %326 = vmatprep.subr.mxu0 0.0
      %327 = vmatpush1.msra.mxu0 0.0
      %328 = vmatprep.subr.mxu0 0.0
      %329 = vmatpush1.msra.mxu0 0.0
      %330 = vmatprep.subr.mxu0 0.0
      %331 = vmatpush1.msra.mxu0 0.0
      %332 = vmatprep.subr.mxu0 0.0
      %333 = vmatpush1.msra.mxu0 0.0
      %334 = vmatprep.subr.mxu0 0.0
      %335 = vmatpush1.msra.mxu0 0.0
      %336 = vmatprep.subr.mxu0 0.0
      %337 = vmatpush1.msra.mxu0 0.0
      %338 = vmatprep.subr.mxu0 0.0
      %339 = vmatpush1.msra.mxu0 0.0
      %340 = vmatprep.subr.mxu0 0.0
      %341 = vmatpush1.msra.mxu0 0.0
      %342 = vmatprep.mubr.f32.mxu0 0.0
      %343 = vmatmul.mubr.f32.gmra.mrb[0].mxu0 %v276
      %v344 = vpop.f32.mrb[0].mxu0
      %v345 = vadd.f32 %v273, %v344
      %v346 = vpop.f32.mrb[0].mxu0
      %347 = vdwg.mxu0
      %vm348 = vcmp.gt.f32.partialorder %v345, 0.0
      %v349 = vmul.f32 %v345, 1.442695
      %v350 = vpow.pop %v349
      %v351 = vsub.f32 %v350, 1.0
      %v352 = vmul.f32 %v351, 1.6732632
      %v353 = vsel %vm348, %v345, %v352
      %v354 = vmul.f32 %v353, 1.050701
      %v355 = vld [vmem:[#allocation9] sm:$0xff]
      %v356 = vld [vmem:[#allocation9 + $0x8] sm:$0xff]
      %v357 = vld [vmem:[#allocation9 + $0x10] sm:$0xff]
      %v358 = vld [vmem:[#allocation9 + $0x18] sm:$0xff]
      %v359 = vld [vmem:[#allocation9 + $0x20] sm:$0xff]
      %v360 = vld [vmem:[#allocation9 + $0x28] sm:$0xff]
      %v361 = vld [vmem:[#allocation9 + $0x30] sm:$0xff]
      %v362 = vld [vmem:[#allocation9 + $0x38] sm:$0xff]
      %v363 = vld [vmem:[#allocation9 + $0x40] sm:$0xff]
      %v364 = vld [vmem:[#allocation9 + $0x48] sm:$0xff]
      %v365 = vld [vmem:[#allocation9 + $0x50] sm:$0xff]
      %v366 = vld [vmem:[#allocation9 + $0x58] sm:$0xff]
      %v367 = vld [vmem:[#allocation9 + $0x60] sm:$0xff]
      %v368 = vld [vmem:[#allocation9 + $0x68] sm:$0xff]
      %v369 = vld [vmem:[#allocation9 + $0x70] sm:$0xff]
      %v370 = vld [vmem:[#allocation9 + $0x78] sm:$0xff]
      %v371 = vld [vmem:[%s5] sm:$0x1]
      %v373 = vlaneseq
      %v374 = vshrl.u32 %v373, 7
      %v375 = vsub.s32 0, %v374
      %v376 = vrot.slane %v371, %v375
      %378 = vmatprep.subr.mxu0 0.0
      %379 = vmatpush1.msra.mxu0 %v355
      %380 = vmatprep.subr.mxu0 0.0
      %381 = vmatpush1.msra.mxu0 %v356
      %382 = vmatprep.subr.mxu0 0.0
      %383 = vmatpush1.msra.mxu0 %v357
      %384 = vmatprep.subr.mxu0 0.0
      %385 = vmatpush1.msra.mxu0 %v358
      %386 = vmatprep.subr.mxu0 0.0
      %387 = vmatpush1.msra.mxu0 %v359
      %388 = vmatprep.subr.mxu0 0.0
      %389 = vmatpush1.msra.mxu0 %v360
      %390 = vmatprep.subr.mxu0 0.0
      %391 = vmatpush1.msra.mxu0 %v361
      %392 = vmatprep.subr.mxu0 0.0
      %393 = vmatpush1.msra.mxu0 %v362
      %394 = vmatprep.subr.mxu0 0.0
      %395 = vmatpush1.msra.mxu0 %v363
      %396 = vmatprep.subr.mxu0 0.0
      %397 = vmatpush1.msra.mxu0 %v364
      %398 = vmatprep.subr.mxu0 0.0
      %399 = vmatpush1.msra.mxu0 %v365
      %400 = vmatprep.subr.mxu0 0.0
      %401 = vmatpush1.msra.mxu0 %v366
      %402 = vmatprep.subr.mxu0 0.0
      %403 = vmatpush1.msra.mxu0 %v367
      %404 = vmatprep.subr.mxu0 0.0
      %405 = vmatpush1.msra.mxu0 %v368
      %406 = vmatprep.subr.mxu0 0.0
      %407 = vmatpush1.msra.mxu0 %v369
      %408 = vmatprep.subr.mxu0 0.0
      %409 = vmatpush1.msra.mxu0 %v370
      %410 = vmatprep.subr.mxu0 0.0
      %411 = vmatpush1.msra.mxu0 0.0
      %412 = vmatprep.subr.mxu0 0.0
      %413 = vmatpush1.msra.mxu0 0.0
      %414 = vmatprep.subr.mxu0 0.0
      %415 = vmatpush1.msra.mxu0 0.0
      %416 = vmatprep.subr.mxu0 0.0
      %417 = vmatpush1.msra.mxu0 0.0
      %418 = vmatprep.subr.mxu0 0.0
      %419 = vmatpush1.msra.mxu0 0.0
      %420 = vmatprep.subr.mxu0 0.0
      %421 = vmatpush1.msra.mxu0 0.0
      %422 = vmatprep.subr.mxu0 0.0
      %423 = vmatpush1.msra.mxu0 0.0
      %424 = vmatprep.subr.mxu0 0.0
      %425 = vmatpush1.msra.mxu0 0.0
      %426 = vmatprep.subr.mxu0 0.0
      %427 = vmatpush1.msra.mxu0 0.0
      %428 = vmatprep.subr.mxu0 0.0
      %429 = vmatpush1.msra.mxu0 0.0
      %430 = vmatprep.subr.mxu0 0.0
      %431 = vmatpush1.msra.mxu0 0.0
      %432 = vmatprep.subr.mxu0 0.0
      %433 = vmatpush1.msra.mxu0 0.0
      %434 = vmatprep.subr.mxu0 0.0
      %435 = vmatpush1.msra.mxu0 0.0
      %436 = vmatprep.subr.mxu0 0.0
      %437 = vmatpush1.msra.mxu0 0.0
      %438 = vmatprep.subr.mxu0 0.0
      %439 = vmatpush1.msra.mxu0 0.0
      %440 = vmatprep.subr.mxu0 0.0
      %441 = vmatpush1.msra.mxu0 0.0
      %442 = vmatprep.mubr.f32.mxu0 0.0
      %443 = vmatmul.mubr.f32.gmra.mrb[0].mxu0 %v354
      %v444 = vpop.f32.mrb[0].mxu0
      %v445 = vadd.f32 %v376, %v444
      %v446 = vpop.f32.mrb[0].mxu0
      %447 = vdwg.mxu0
      %vm448 = vcmp.gt.f32.partialorder %v445, 0.0
      %v449 = vmul.f32 %v445, 1.442695
      %v450 = vpow.pop %v449
      %v451 = vsub.f32 %v450, 1.0
      %v452 = vmul.f32 %v451, 1.6732632
      %v453 = vsel %vm448, %v445, %v452
      %v454 = vmul.f32 %v453, 1.050701
      %v455 = vld [vmem:[#allocation11] sm:$0xff]
      %v456 = vld [vmem:[#allocation11 + $0x8] sm:$0xff]
      %v457 = vld [vmem:[#allocation11 + $0x10] sm:$0xff]
      %v458 = vld [vmem:[#allocation11 + $0x18] sm:$0xff]
      %v459 = vld [vmem:[#allocation11 + $0x20] sm:$0xff]
      %v460 = vld [vmem:[#allocation11 + $0x28] sm:$0xff]
      %v461 = vld [vmem:[#allocation11 + $0x30] sm:$0xff]
      %v462 = vld [vmem:[#allocation11 + $0x38] sm:$0xff]
      %v463 = vld [vmem:[#allocation11 + $0x40] sm:$0xff]
      %v464 = vld [vmem:[#allocation11 + $0x48] sm:$0xff]
      %v465 = vld [vmem:[#allocation11 + $0x50] sm:$0xff]
      %v466 = vld [vmem:[#allocation11 + $0x58] sm:$0xff]
      %v467 = vld [vmem:[#allocation11 + $0x60] sm:$0xff]
      %v468 = vld [vmem:[#allocation11 + $0x68] sm:$0xff]
      %v469 = vld [vmem:[#allocation11 + $0x70] sm:$0xff]
      %v470 = vld [vmem:[#allocation11 + $0x78] sm:$0xff]
      %v471 = vld [vmem:[%s7] sm:$0x1]
      %v473 = vlaneseq
      %v474 = vshrl.u32 %v473, 7
      %v475 = vsub.s32 0, %v474
      %v476 = vrot.slane %v471, %v475
      %478 = vmatprep.subr.mxu0 0.0
      %479 = vmatpush1.msra.mxu0 %v455
      %480 = vmatprep.subr.mxu0 0.0
      %481 = vmatpush1.msra.mxu0 %v456
      %482 = vmatprep.subr.mxu0 0.0
      %483 = vmatpush1.msra.mxu0 %v457
      %484 = vmatprep.subr.mxu0 0.0
      %485 = vmatpush1.msra.mxu0 %v458
      %486 = vmatprep.subr.mxu0 0.0
      %487 = vmatpush1.msra.mxu0 %v459
      %488 = vmatprep.subr.mxu0 0.0
      %489 = vmatpush1.msra.mxu0 %v460
      %490 = vmatprep.subr.mxu0 0.0
      %491 = vmatpush1.msra.mxu0 %v461
      %492 = vmatprep.subr.mxu0 0.0
      %493 = vmatpush1.msra.mxu0 %v462
      %494 = vmatprep.subr.mxu0 0.0
      %495 = vmatpush1.msra.mxu0 %v463
      %496 = vmatprep.subr.mxu0 0.0
      %497 = vmatpush1.msra.mxu0 %v464
      %498 = vmatprep.subr.mxu0 0.0
      %499 = vmatpush1.msra.mxu0 %v465
      %500 = vmatprep.subr.mxu0 0.0
      %501 = vmatpush1.msra.mxu0 %v466
      %502 = vmatprep.subr.mxu0 0.0
      %503 = vmatpush1.msra.mxu0 %v467
      %504 = vmatprep.subr.mxu0 0.0
      %505 = vmatpush1.msra.mxu0 %v468
      %506 = vmatprep.subr.mxu0 0.0
      %507 = vmatpush1.msra.mxu0 %v469
      %508 = vmatprep.subr.mxu0 0.0
      %509 = vmatpush1.msra.mxu0 %v470
      %510 = vmatprep.subr.mxu0 0.0
      %511 = vmatpush1.msra.mxu0 0.0
      %512 = vmatprep.subr.mxu0 0.0
      %513 = vmatpush1.msra.mxu0 0.0
      %514 = vmatprep.subr.mxu0 0.0
      %515 = vmatpush1.msra.mxu0 0.0
      %516 = vmatprep.subr.mxu0 0.0
      %517 = vmatpush1.msra.mxu0 0.0
      %518 = vmatprep.subr.mxu0 0.0
      %519 = vmatpush1.msra.mxu0 0.0
      %520 = vmatprep.subr.mxu0 0.0
      %521 = vmatpush1.msra.mxu0 0.0
      %522 = vmatprep.subr.mxu0 0.0
      %523 = vmatpush1.msra.mxu0 0.0
      %524 = vmatprep.subr.mxu0 0.0
      %525 = vmatpush1.msra.mxu0 0.0
      %526 = vmatprep.subr.mxu0 0.0
      %527 = vmatpush1.msra.mxu0 0.0
      %528 = vmatprep.subr.mxu0 0.0
      %529 = vmatpush1.msra.mxu0 0.0
      %530 = vmatprep.subr.mxu0 0.0
      %531 = vmatpush1.msra.mxu0 0.0
      %532 = vmatprep.subr.mxu0 0.0
      %533 = vmatpush1.msra.mxu0 0.0
      %534 = vmatprep.subr.mxu0 0.0
      %535 = vmatpush1.msra.mxu0 0.0
      %536 = vmatprep.subr.mxu0 0.0
      %537 = vmatpush1.msra.mxu0 0.0
      %538 = vmatprep.subr.mxu0 0.0
      %539 = vmatpush1.msra.mxu0 0.0
      %540 = vmatprep.subr.mxu0 0.0
      %541 = vmatpush1.msra.mxu0 0.0
      %542 = vmatprep.mubr.f32.mxu0 0.0
      %543 = vmatmul.mubr.f32.gmra.mrb[0].mxu0 %v454
      %v544 = vpop.f32.mrb[0].mxu0
      %v545 = vadd.f32 %v476, %v544
      %v546 = vpop.f32.mrb[0].mxu0
      %547 = vdwg.mxu0
      %vm548 = vcmp.gt.f32.partialorder %v545, 0.0
      %v549 = vmul.f32 %v545, 1.442695
      %v550 = vpow.pop %v549
      %v551 = vsub.f32 %v550, 1.0
      %v552 = vmul.f32 %v551, 1.6732632
      %v553 = vsel %vm548, %v545, %v552
      %v554 = vmul.f32 %v553, 1.050701
      %555 = vst [vmem:[#allocation12] sm:$0xff] %v554
    $region61: #{tpu_custom_call.1} parent=1 // pred_fallthru
      _
    // Predicated region
    $region62: #{tpu_custom_call.1} parent=1 // pred_check
      _
    $region63: #{tpu_custom_call.1} parent=1 // pred_check_branch
      %557 = sbr.rel (0) target = $region65
    $region64: #{tpu_custom_call.1} parent=1 // pred_region
      %s559 = ssub.s32 128, 128
      %560 = vsyncadd [#allocation5], %s559
      %s562 = sshll.u32 [#allocation12], 4
      %s563 = int_to_ptr.vmem [resolvable:$true] %s562
      %565 = dma.vmem_to_hbm [thread:$0]  %s563, 128, %s8, [#allocation5]
    $region65: #{tpu_custom_call.1} parent=1 // pred_fallthru
      _
    // Predicated region
    $region66: #{tpu_custom_call.1} parent=1 // pred_check
      _
    $region67: #{tpu_custom_call.1} parent=1 // pred_check_branch
      %567 = sbr.rel (0) target = $region69
    $region68: #{tpu_custom_call.1} parent=1 // pred_region
      %568 = dma.done [#allocation5], 128
    $region69: #{tpu_custom_call.1} parent=1 // pred_fallthru
      _
    %569 = vsyncpa [#allocation4], 1
    %570 = vsyncpa [#allocation7], 1
    %571 = vsyncpa [#allocation10], 1
    %572 = vsyncpa [#allocation5], 1

// kernel: tpu_custom_call.1
$region0: #{tpu_custom_call.1}
  #allocation0 [shape = 'u32[]', space=smem, size = 0x4, offset = 0x4, fixed_abs, tag = 'smem constant byte address 0x4 - core index']
  #allocation1 [shape = 'u32[144,128]{1,0:T(1,128)}', space=vmem, size = 0x12000, scoped, tag = 'internal scratch']
  #allocation2 [shape = 'f32[8,32]{1,0:T(8,128)}', space=vmem, size = 0x1000, scoped, tag = 'scratch operand']
  %s0 = inlined_call_operand.hbm [shape: f32[8,8,32], index: 0, kind: input, shape index: {}]
  %s1 = inlined_call_operand.hbm [shape: bf16[8,8], index: 1, kind: input, shape index: {}]
  %s2 = inlined_call_operand.hbm [shape: f32[32,128], index: 2, kind: input, shape index: {}]
  %s3 = inlined_call_operand.vmem [shape: f32[1,128], index: 3, kind: input, shape index: {}]
  %s4 = inlined_call_operand.hbm [shape: f32[128,128], index: 4, kind: input, shape index: {}]
  %s5 = inlined_call_operand.vmem [shape: f32[1,128], index: 5, kind: input, shape index: {}]
  %s6 = inlined_call_operand.hbm [shape: f32[128,128], index: 6, kind: input, shape index: {}]
  %s7 = inlined_call_operand.vmem [shape: f32[1,128], index: 7, kind: input, shape index: {}]
  %s8 = inlined_call_operand.hbm [shape: f32[8,128], index: 8, kind: output, shape index: {}]
  %s9 = sld [smem:[#allocation0]]
  $region70: #{tpu_custom_call.1} parent=0
    _
  %s11 = ssub.s32 1, %s9
  %s12 = scalar_select 0, %s11, %s9
  $region1: #{tpu_custom_call.1} parent=0
    #allocation3 [shape = 'u8[32768]{0}', space=vmem, size = 0x8000, scoped, tag = 'input window, operand 0, single buffered']
    #allocation4 [shape = 's32[1]{0}', space=sflag, size = 0x4, scoped, tag = 'scoped memory for tpu_custom_call.1']
    #allocation5 [shape = 's32[1]{0}', space=sflag, size = 0x4, scoped, tag = 'scoped memory for tpu_custom_call.1']
    #allocation6 [shape = 'u8[2048]{0}', space=vmem, size = 0x800, scoped, tag = 'input window, operand 1, single buffered']
    #allocation7 [shape = 's32[1]{0}', space=sflag, size = 0x4, scoped, tag = 'scoped memory for tpu_custom_call.1']
    #allocation8 [shape = 'u8[16384]{0}', space=vmem, size = 0x4000, scoped, tag = 'input window, operand 2, single buffered']
    #allocation9 [shape = 'u8[65536]{0}', space=vmem, size = 0x10000, scoped, tag = 'input window, operand 4, single buffered']
    #allocation10 [shape = 's32[1]{0}', space=sflag, size = 0x4, scoped, tag = 'scoped memory for tpu_custom_call.1']
    #allocation11 [shape = 'u8[65536]{0}', space=vmem, size = 0x10000, scoped, tag = 'input window, operand 6, single buffered']
    #allocation12 [shape = 'u8[4096]{0}', space=vmem, size = 0x1000, scoped, tag = 'output window, operand 0, single buffered']
    %13 = vsyncpa [#allocation4], 0
    %14 = vsyncpa [#allocation7], 0
    %15 = vsyncpa [#allocation10], 0
    %16 = vsyncpa [#allocation5], 0
    // Predicated region
    $region2: #{tpu_custom_call.1} parent=1 // pred_check
      _
    $region3: #{tpu_custom_call.1} parent=1 // pred_check_branch
      %18 = sbr.rel (0) target = $region5
    $region4: #{tpu_custom_call.1} parent=1 // pred_region
      %s20 = ssub.s32 1024, 1024
      %21 = vsyncadd [#allocation4], %s20
      %s22 = sshll.u32 [#allocation3], 4
      %s23 = int_to_ptr.vmem [resolvable:$true] %s22
      %28 = dma.hbm_to_vmem [thread:$0]  %s0, 1024, %s23, [#allocation4], 128, 128, 8
    $region5: #{tpu_custom_call.1} parent=1 // pred_fallthru
      _
    // Predicated region
    $region6: #{tpu_custom_call.1} parent=1 // pred_check
      _
    $region7: #{tpu_custom_call.1} parent=1 // pred_check_branch
      %30 = sbr.rel (0) target = $region9
    $region8: #{tpu_custom_call.1} parent=1 // pred_region
      %s32 = ssub.s32 64, 64
      %33 = vsyncadd [#allocation7], %s32
      %s35 = sshll.u32 [#allocation6], 4
      %s36 = int_to_ptr.vmem [resolvable:$true] %s35
      %38 = dma.hbm_to_vmem [thread:$0]  %s1, 64, %s36, [#allocation7]
    $region9: #{tpu_custom_call.1} parent=1 // pred_fallthru
      _
    // Predicated region
    $region10: #{tpu_custom_call.1} parent=1 // pred_check
      _
    $region11: #{tpu_custom_call.1} parent=1 // pred_check_branch
      %40 = sbr.rel (0) target = $region13
    $region12: #{tpu_custom_call.1} parent=1 // pred_region
      %s42 = ssub.s32 512, 512
      %43 = vsyncadd [#allocation7], %s42
      %s44 = sshll.u32 [#allocation8], 4
      %s45 = int_to_ptr.vmem [resolvable:$true] %s44
      %50 = dma.hbm_to_vmem [thread:$0]  %s2, 512, %s45, [#allocation7], 128, 128, 8
    $region13: #{tpu_custom_call.1} parent=1 // pred_fallthru
      _
    // Predicated region
    $region14: #{tpu_custom_call.1} parent=1 // pred_check
      _
    $region15: #{tpu_custom_call.1} parent=1 // pred_check_branch
      %52 = sbr.rel (0) target = $region17
    $region16: #{tpu_custom_call.1} parent=1 // pred_region
      _
    $region17: #{tpu_custom_call.1} parent=1 // pred_fallthru
      _
    // Predicated region
    $region18: #{tpu_custom_call.1} parent=1 // pred_check
      _
    $region19: #{tpu_custom_call.1} parent=1 // pred_check_branch
      %54 = sbr.rel (0) target = $region21
    $region20: #{tpu_custom_call.1} parent=1 // pred_region
      %s56 = ssub.s32 2048, 2048
      %57 = vsyncadd [#allocation10], %s56
      %s58 = sshll.u32 [#allocation9], 4
      %s59 = int_to_ptr.vmem [resolvable:$true] %s58
      %64 = dma.hbm_to_vmem [thread:$0]  %s4, 2048, %s59, [#allocation10], 128, 128, 8
    $region21: #{tpu_custom_call.1} parent=1 // pred_fallthru
      _
    // Predicated region
    $region22: #{tpu_custom_call.1} parent=1 // pred_check
      _
    $region23: #{tpu_custom_call.1} parent=1 // pred_check_branch
      %66 = sbr.rel (0) target = $region25
    $region24: #{tpu_custom_call.1} parent=1 // pred_region
      _
    $region25: #{tpu_custom_call.1} parent=1 // pred_fallthru
      _
    // Predicated region
    $region26: #{tpu_custom_call.1} parent=1 // pred_check
      _
    $region27: #{tpu_custom_call.1} parent=1 // pred_check_branch
      %68 = sbr.rel (0) target = $region29
    $region28: #{tpu_custom_call.1} parent=1 // pred_region
      %s70 = ssub.s32 2048, 2048
      %71 = vsyncadd [#allocation10], %s70
      %s72 = sshll.u32 [#allocation11], 4
      %s73 = int_to_ptr.vmem [resolvable:$true] %s72
      %78 = dma.hbm_to_vmem [thread:$0]  %s6, 2048, %s73, [#allocation10], 128, 128, 8
    $region29: #{tpu_custom_call.1} parent=1 // pred_fallthru
      _
    // Predicated region
    $region30: #{tpu_custom_call.1} parent=1 // pred_check
      _
    $region31: #{tpu_custom_call.1} parent=1 // pred_check_branch
      %80 = sbr.rel (0) target = $region33
    $region32: #{tpu_custom_call.1} parent=1 // pred_region
      _
    $region33: #{tpu_custom_call.1} parent=1 // pred_fallthru
      _
    // Predicated region
    $region34: #{tpu_custom_call.1} parent=1 // pred_check
      _
    $region35: #{tpu_custom_call.1} parent=1 // pred_check_branch
      %82 = sbr.rel (0) target = $region37
    $region36: #{tpu_custom_call.1} parent=1 // pred_region
      %83 = dma.done [#allocation4], 1024
    $region37: #{tpu_custom_call.1} parent=1 // pred_fallthru
      _
    // Predicated region
    $region38: #{tpu_custom_call.1} parent=1 // pred_check
      _
    $region39: #{tpu_custom_call.1} parent=1 // pred_check_branch
      %85 = sbr.rel (0) target = $region41
    $region40: #{tpu_custom_call.1} parent=1 // pred_region
      %86 = dma.done [#allocation7], 64
    $region41: #{tpu_custom_call.1} parent=1 // pred_fallthru
      _
    // Predicated region
    $region42: #{tpu_custom_call.1} parent=1 // pred_check
      _
    $region43: #{tpu_custom_call.1} parent=1 // pred_check_branch
      %88 = sbr.rel (0) target = $region45
    $region44: #{tpu_custom_call.1} parent=1 // pred_region
      %89 = dma.done [#allocation7], 512
    $region45: #{tpu_custom_call.1} parent=1 // pred_fallthru
      _
    // Predicated region
    $region46: #{tpu_custom_call.1} parent=1 // pred_check
      _
    $region47: #{tpu_custom_call.1} parent=1 // pred_check_branch
      %91 = sbr.rel (0) target = $region49
    $region48: #{tpu_custom_call.1} parent=1 // pred_region
      %92 = dma.done [#allocation10], 2048
    $region49: #{tpu_custom_call.1} parent=1 // pred_fallthru
      _
    // Predicated region
    $region50: #{tpu_custom_call.1} parent=1 // pred_check
      _
    $region51: #{tpu_custom_call.1} parent=1 // pred_check_branch
      %94 = sbr.rel (0) target = $region53
    $region52: #{tpu_custom_call.1} parent=1 // pred_region
      %95 = dma.done [#allocation10], 2048
    $region53: #{tpu_custom_call.1} parent=1 // pred_fallthru
      _
    %p96 = scmp.eq.s32.totalorder 0, 0
    // Predicated region
    $region54: #{tpu_custom_call.1} parent=1 // pred_check
      %p97 = pneg %p96
    $region55: #{tpu_custom_call.1} parent=1 // pred_check_branch
      %99 = sbr.rel (%p97) target = $region57
    $region56: #{tpu_custom_call.1} parent=1 // pred_region
      %vm100 = vcmask 261120
      %101 = vst.msk [vmem:[#allocation2] sm:$0xff] %vm100, 0.0
    $region57: #{tpu_custom_call.1} parent=1 // pred_fallthru
      _
    %v102 = vld [vmem:[#allocation6] sm:$0xf]
    %v103 = vunpack.c.l.bf16 %v102
    %v104 = vld [vmem:[#allocation2] sm:$0xff]
    %v105 = vld [vmem:[#allocation3] sm:$0xff]
    %v106 = vld [vmem:[#allocation3 + $0x8] sm:$0xff]
    %v107 = vld [vmem:[#allocation3 + $0x10] sm:$0xff]
    %v108 = vld [vmem:[#allocation3 + $0x18] sm:$0xff]
    %v109 = vld [vmem:[#allocation3 + $0x20] sm:$0xff]
    %v110 = vld [vmem:[#allocation3 + $0x28] sm:$0xff]
    %v111 = vld [vmem:[#allocation3 + $0x30] sm:$0xff]
    %v112 = vld [vmem:[#allocation3 + $0x38] sm:$0xff]
    %v113 = vlaneseq
    %v114 = vshrl.u32 %v113, 7
    %v115 = vsub.s32 0, %v114
    %v116 = vrot.slane %v103, %v115
    %118 = vbcast.lane.b32.xlu0 %v116, 256
    %v119 = vpop.permute.xlu0 %118
    %v120 = vlaneseq
    %v121 = vshrl.u32 %v120, 7
    %v122 = vsub.s32 1, %v121
    %v123 = vrot.slane %v103, %v122
    %125 = vbcast.lane.b32.xlu0 %v123, 256
    %v126 = vpop.permute.xlu0 %125
    %v127 = vlaneseq
    %v128 = vshrl.u32 %v127, 7
    %v129 = vsub.s32 2, %v128
    %v130 = vrot.slane %v103, %v129
    %132 = vbcast.lane.b32.xlu0 %v130, 256
    %v133 = vpop.permute.xlu0 %132
    %v134 = vlaneseq
    %v135 = vshrl.u32 %v134, 7
    %v136 = vsub.s32 3, %v135
    %v137 = vrot.slane %v103, %v136
    %139 = vbcast.lane.b32.xlu0 %v137, 256
    %v140 = vpop.permute.xlu0 %139
    %v141 = vlaneseq
    %v142 = vshrl.u32 %v141, 7
    %v143 = vsub.s32 4, %v142
    %v144 = vrot.slane %v103, %v143
    %146 = vbcast.lane.b32.xlu0 %v144, 256
    %v147 = vpop.permute.xlu0 %146
    %v148 = vlaneseq
    %v149 = vshrl.u32 %v148, 7
    %v150 = vsub.s32 5, %v149
    %v151 = vrot.slane %v103, %v150
    %153 = vbcast.lane.b32.xlu0 %v151, 256
    %v154 = vpop.permute.xlu0 %153
    %v155 = vlaneseq
    %v156 = vshrl.u32 %v155, 7
    %v157 = vsub.s32 6, %v156
    %v158 = vrot.slane %v103, %v157
    %160 = vbcast.lane.b32.xlu0 %v158, 256
    %v161 = vpop.permute.xlu0 %160
    %v162 = vlaneseq
    %v163 = vshrl.u32 %v162, 7
    %v164 = vsub.s32 7, %v163
    %v165 = vrot.slane %v103, %v164
    %167 = vbcast.lane.b32.xlu0 %v165, 256
    %v168 = vpop.permute.xlu0 %167
    %v169 = vmul.f32 %v105, %v119
    %v170 = vmul.f32 %v106, %v126
    %v171 = vmul.f32 %v107, %v133
    %v172 = vmul.f32 %v108, %v140
    %v173 = vmul.f32 %v109, %v147
    %v174 = vmul.f32 %v110, %v154
    %v175 = vmul.f32 %v111, %v161
    %v176 = vmul.f32 %v112, %v168
    %vm177 = vcmask 261120
    %v178 = vsel %vm177, %v169, 0.0
    %v179 = vrot.slane %v178, 4
    %v180 = vadd.f32 %v178, %v179
    %v181 = vrot.slane %v180, 2
    %v182 = vadd.f32 %v180, %v181
    %v183 = vrot.slane %v182, 1
    %v184 = vadd.f32 %v182, %v183
    %v185 = vsel %vm177, %v170, 0.0
    %v186 = vrot.slane %v185, 4
    %v187 = vadd.f32 %v185, %v186
    %v188 = vrot.slane %v187, 2
    %v189 = vadd.f32 %v187, %v188
    %v190 = vrot.slane %v189, 1
    %v191 = vadd.f32 %v189, %v190
    %v192 = vsel %vm177, %v171, 0.0
    %v193 = vrot.slane %v192, 4
    %v194 = vadd.f32 %v192, %v193
    %v195 = vrot.slane %v194, 2
    %v196 = vadd.f32 %v194, %v195
    %v197 = vrot.slane %v196, 1
    %v198 = vadd.f32 %v196, %v197
    %v199 = vsel %vm177, %v172, 0.0
    %v200 = vrot.slane %v199, 4
    %v201 = vadd.f32 %v199, %v200
    %v202 = vrot.slane %v201, 2
    %v203 = vadd.f32 %v201, %v202
    %v204 = vrot.slane %v203, 1
    %v205 = vadd.f32 %v203, %v204
    %v206 = vsel %vm177, %v173, 0.0
    %v207 = vrot.slane %v206, 4
    %v208 = vadd.f32 %v206, %v207
    %v209 = vrot.slane %v208, 2
    %v210 = vadd.f32 %v208, %v209
    %v211 = vrot.slane %v210, 1
    %v212 = vadd.f32 %v210, %v211
    %v213 = vsel %vm177, %v174, 0.0
    %v214 = vrot.slane %v213, 4
    %v215 = vadd.f32 %v213, %v214
    %v216 = vrot.slane %v215, 2
    %v217 = vadd.f32 %v215, %v216
    %v218 = vrot.slane %v217, 1
    %v219 = vadd.f32 %v217, %v218
    %v220 = vsel %vm177, %v175, 0.0
    %v221 = vrot.slane %v220, 4
    %v222 = vadd.f32 %v220, %v221
    %v223 = vrot.slane %v222, 2
    %v224 = vadd.f32 %v222, %v223
    %v225 = vrot.slane %v224, 1
    %v226 = vadd.f32 %v224, %v225
    %v227 = vsel %vm177, %v176, 0.0
    %v228 = vrot.slane %v227, 4
    %v229 = vadd.f32 %v227, %v228
    %v230 = vrot.slane %v229, 2
    %v231 = vadd.f32 %v229, %v230
    %v232 = vrot.slane %v231, 1
    %v233 = vadd.f32 %v231, %v232
    %vm242 = vcmask 1041409
    %v243 = vsel %vm242, %v191, %v184
    %vm244 = vcmask 1042434
    %v245 = vsel %vm244, %v198, %v243
    %vm246 = vcmask 1043459
    %v247 = vsel %vm246, %v205, %v245
    %vm248 = vcmask 1044484
    %v249 = vsel %vm248, %v212, %v247
    %vm250 = vcmask 1045509
    %v251 = vsel %vm250, %v219, %v249
    %vm252 = vcmask 1046534
    %v253 = vsel %vm252, %v226, %v251
    %vm254 = vcmask 1047559
    %v255 = vsel %vm254, %v233, %v253
    %v257 = vadd.f32 %v104, %v255
    %258 = vst.msk [vmem:[#allocation2] sm:$0xff] %vm177, %v257
    // Predicated region
    $region58: #{tpu_custom_call.1} parent=1 // pred_check
      %p259 = pneg %p96
    $region59: #{tpu_custom_call.1} parent=1 // pred_check_branch
      %261 = sbr.rel (%p259) target = $region61
    $region60: #{tpu_custom_call.1} parent=1 // pred_region
      %v262 = vld [vmem:[#allocation2] sm:$0xff]
      %v263 = vmul.f32 %v262, 0.125
      %v264 = vld [vmem:[#allocation8] sm:$0xff]
      %v265 = vld [vmem:[#allocation8 + $0x8] sm:$0xff]
      %v266 = vld [vmem:[#allocation8 + $0x10] sm:$0xff]
      %v267 = vld [vmem:[#allocation8 + $0x18] sm:$0xff]
      %v268 = vld [vmem:[%s3] sm:$0x1]
      %v270 = vlaneseq
      %v271 = vshrl.u32 %v270, 7
      %v272 = vsub.s32 0, %v271
      %v273 = vrot.slane %v268, %v272
      %v276 = vsel %vm177, %v263, 0
      %278 = vmatprep.subr.mxu0 0.0
      %279 = vmatpush1.msra.mxu0 %v264
      %280 = vmatprep.subr.mxu0 0.0
      %281 = vmatpush1.msra.mxu0 %v265
      %282 = vmatprep.subr.mxu0 0.0
      %283 = vmatpush1.msra.mxu0 %v266
      %284 = vmatprep.subr.mxu0 0.0
      %285 = vmatpush1.msra.mxu0 %v267
      %286 = vmatprep.subr.mxu0 0.0
      %287 = vmatpush1.msra.mxu0 0.0
      %288 = vmatprep.subr.mxu0 0.0
      %289 = vmatpush1.msra.mxu0 0.0
      %290 = vmatprep.subr.mxu0 0.0
      %291 = vmatpush1.msra.mxu0 0.0
      %292 = vmatprep.subr.mxu0 0.0
      %293 = vmatpush1.msra.mxu0 0.0
      %294 = vmatprep.subr.mxu0 0.0
      %295 = vmatpush1.msra.mxu0 0.0
      %296 = vmatprep.subr.mxu0 0.0
      %297 = vmatpush1.msra.mxu0 0.0
      %298 = vmatprep.subr.mxu0 0.0
      %299 = vmatpush1.msra.mxu0 0.0
      %300 = vmatprep.subr.mxu0 0.0
      %301 = vmatpush1.msra.mxu0 0.0
      %302 = vmatprep.subr.mxu0 0.0
      %303 = vmatpush1.msra.mxu0 0.0
      %304 = vmatprep.subr.mxu0 0.0
      %305 = vmatpush1.msra.mxu0 0.0
      %306 = vmatprep.subr.mxu0 0.0
      %307 = vmatpush1.msra.mxu0 0.0
      %308 = vmatprep.subr.mxu0 0.0
      %309 = vmatpush1.msra.mxu0 0.0
      %310 = vmatprep.subr.mxu0 0.0
      %311 = vmatpush1.msra.mxu0 0.0
      %312 = vmatprep.subr.mxu0 0.0
      %313 = vmatpush1.msra.mxu0 0.0
      %314 = vmatprep.subr.mxu0 0.0
      %315 = vmatpush1.msra.mxu0 0.0
      %316 = vmatprep.subr.mxu0 0.0
      %317 = vmatpush1.msra.mxu0 0.0
      %318 = vmatprep.subr.mxu0 0.0
      %319 = vmatpush1.msra.mxu0 0.0
      %320 = vmatprep.subr.mxu0 0.0
      %321 = vmatpush1.msra.mxu0 0.0
      %322 = vmatprep.subr.mxu0 0.0
      %323 = vmatpush1.msra.mxu0 0.0
      %324 = vmatprep.subr.mxu0 0.0
      %325 = vmatpush1.msra.mxu0 0.0
      %326 = vmatprep.subr.mxu0 0.0
      %327 = vmatpush1.msra.mxu0 0.0
      %328 = vmatprep.subr.mxu0 0.0
      %329 = vmatpush1.msra.mxu0 0.0
      %330 = vmatprep.subr.mxu0 0.0
      %331 = vmatpush1.msra.mxu0 0.0
      %332 = vmatprep.subr.mxu0 0.0
      %333 = vmatpush1.msra.mxu0 0.0
      %334 = vmatprep.subr.mxu0 0.0
      %335 = vmatpush1.msra.mxu0 0.0
      %336 = vmatprep.subr.mxu0 0.0
      %337 = vmatpush1.msra.mxu0 0.0
      %338 = vmatprep.subr.mxu0 0.0
      %339 = vmatpush1.msra.mxu0 0.0
      %340 = vmatprep.subr.mxu0 0.0
      %341 = vmatpush1.msra.mxu0 0.0
      %342 = vmatprep.mubr.f32.mxu0 0.0
      %343 = vmatmul.mubr.f32.gmra.mrb[0].mxu0 %v276
      %v344 = vpop.f32.mrb[0].mxu0
      %v345 = vadd.f32 %v273, %v344
      %v346 = vpop.f32.mrb[0].mxu0
      %347 = vdwg.mxu0
      %vm348 = vcmp.gt.f32.partialorder %v345, 0.0
      %v349 = vmul.f32 %v345, 1.442695
      %v350 = vpow.pop %v349
      %v351 = vsub.f32 %v350, 1.0
      %v352 = vmul.f32 %v351, 1.6732632
      %v353 = vsel %vm348, %v345, %v352
      %v354 = vmul.f32 %v353, 1.050701
      %v355 = vld [vmem:[#allocation9] sm:$0xff]
      %v356 = vld [vmem:[#allocation9 + $0x8] sm:$0xff]
      %v357 = vld [vmem:[#allocation9 + $0x10] sm:$0xff]
      %v358 = vld [vmem:[#allocation9 + $0x18] sm:$0xff]
      %v359 = vld [vmem:[#allocation9 + $0x20] sm:$0xff]
      %v360 = vld [vmem:[#allocation9 + $0x28] sm:$0xff]
      %v361 = vld [vmem:[#allocation9 + $0x30] sm:$0xff]
      %v362 = vld [vmem:[#allocation9 + $0x38] sm:$0xff]
      %v363 = vld [vmem:[#allocation9 + $0x40] sm:$0xff]
      %v364 = vld [vmem:[#allocation9 + $0x48] sm:$0xff]
      %v365 = vld [vmem:[#allocation9 + $0x50] sm:$0xff]
      %v366 = vld [vmem:[#allocation9 + $0x58] sm:$0xff]
      %v367 = vld [vmem:[#allocation9 + $0x60] sm:$0xff]
      %v368 = vld [vmem:[#allocation9 + $0x68] sm:$0xff]
      %v369 = vld [vmem:[#allocation9 + $0x70] sm:$0xff]
      %v370 = vld [vmem:[#allocation9 + $0x78] sm:$0xff]
      %v371 = vld [vmem:[%s5] sm:$0x1]
      %v373 = vlaneseq
      %v374 = vshrl.u32 %v373, 7
      %v375 = vsub.s32 0, %v374
      %v376 = vrot.slane %v371, %v375
      %378 = vmatprep.subr.mxu0 0.0
      %379 = vmatpush1.msra.mxu0 %v355
      %380 = vmatprep.subr.mxu0 0.0
      %381 = vmatpush1.msra.mxu0 %v356
      %382 = vmatprep.subr.mxu0 0.0
      %383 = vmatpush1.msra.mxu0 %v357
      %384 = vmatprep.subr.mxu0 0.0
      %385 = vmatpush1.msra.mxu0 %v358
      %386 = vmatprep.subr.mxu0 0.0
      %387 = vmatpush1.msra.mxu0 %v359
      %388 = vmatprep.subr.mxu0 0.0
      %389 = vmatpush1.msra.mxu0 %v360
      %390 = vmatprep.subr.mxu0 0.0
      %391 = vmatpush1.msra.mxu0 %v361
      %392 = vmatprep.subr.mxu0 0.0
      %393 = vmatpush1.msra.mxu0 %v362
      %394 = vmatprep.subr.mxu0 0.0
      %395 = vmatpush1.msra.mxu0 %v363
      %396 = vmatprep.subr.mxu0 0.0
      %397 = vmatpush1.msra.mxu0 %v364
      %398 = vmatprep.subr.mxu0 0.0
      %399 = vmatpush1.msra.mxu0 %v365
      %400 = vmatprep.subr.mxu0 0.0
      %401 = vmatpush1.msra.mxu0 %v366
      %402 = vmatprep.subr.mxu0 0.0
      %403 = vmatpush1.msra.mxu0 %v367
      %404 = vmatprep.subr.mxu0 0.0
      %405 = vmatpush1.msra.mxu0 %v368
      %406 = vmatprep.subr.mxu0 0.0
      %407 = vmatpush1.msra.mxu0 %v369
      %408 = vmatprep.subr.mxu0 0.0
      %409 = vmatpush1.msra.mxu0 %v370
      %410 = vmatprep.subr.mxu0 0.0
      %411 = vmatpush1.msra.mxu0 0.0
      %412 = vmatprep.subr.mxu0 0.0
      %413 = vmatpush1.msra.mxu0 0.0
      %414 = vmatprep.subr.mxu0 0.0
      %415 = vmatpush1.msra.mxu0 0.0
      %416 = vmatprep.subr.mxu0 0.0
      %417 = vmatpush1.msra.mxu0 0.0
      %418 = vmatprep.subr.mxu0 0.0
      %419 = vmatpush1.msra.mxu0 0.0
      %420 = vmatprep.subr.mxu0 0.0
      %421 = vmatpush1.msra.mxu0 0.0
      %422 = vmatprep.subr.mxu0 0.0
      %423 = vmatpush1.msra.mxu0 0.0
      %424 = vmatprep.subr.mxu0 0.0
      %425 = vmatpush1.msra.mxu0 0.0
      %426 = vmatprep.subr.mxu0 0.0
      %427 = vmatpush1.msra.mxu0 0.0
      %428 = vmatprep.subr.mxu0 0.0
      %429 = vmatpush1.msra.mxu0 0.0
      %430 = vmatprep.subr.mxu0 0.0
      %431 = vmatpush1.msra.mxu0 0.0
      %432 = vmatprep.subr.mxu0 0.0
      %433 = vmatpush1.msra.mxu0 0.0
      %434 = vmatprep.subr.mxu0 0.0
      %435 = vmatpush1.msra.mxu0 0.0
      %436 = vmatprep.subr.mxu0 0.0
      %437 = vmatpush1.msra.mxu0 0.0
      %438 = vmatprep.subr.mxu0 0.0
      %439 = vmatpush1.msra.mxu0 0.0
      %440 = vmatprep.subr.mxu0 0.0
      %441 = vmatpush1.msra.mxu0 0.0
      %442 = vmatprep.mubr.f32.mxu0 0.0
      %443 = vmatmul.mubr.f32.gmra.mrb[0].mxu0 %v354
      %v444 = vpop.f32.mrb[0].mxu0
      %v445 = vadd.f32 %v376, %v444
      %v446 = vpop.f32.mrb[0].mxu0
      %447 = vdwg.mxu0
      %vm448 = vcmp.gt.f32.partialorder %v445, 0.0
      %v449 = vmul.f32 %v445, 1.442695
      %v450 = vpow.pop %v449
      %v451 = vsub.f32 %v450, 1.0
      %v452 = vmul.f32 %v451, 1.6732632
      %v453 = vsel %vm448, %v445, %v452
      %v454 = vmul.f32 %v453, 1.050701
      %v455 = vld [vmem:[#allocation11] sm:$0xff]
      %v456 = vld [vmem:[#allocation11 + $0x8] sm:$0xff]
      %v457 = vld [vmem:[#allocation11 + $0x10] sm:$0xff]
      %v458 = vld [vmem:[#allocation11 + $0x18] sm:$0xff]
      %v459 = vld [vmem:[#allocation11 + $0x20] sm:$0xff]
      %v460 = vld [vmem:[#allocation11 + $0x28] sm:$0xff]
      %v461 = vld [vmem:[#allocation11 + $0x30] sm:$0xff]
      %v462 = vld [vmem:[#allocation11 + $0x38] sm:$0xff]
      %v463 = vld [vmem:[#allocation11 + $0x40] sm:$0xff]
      %v464 = vld [vmem:[#allocation11 + $0x48] sm:$0xff]
      %v465 = vld [vmem:[#allocation11 + $0x50] sm:$0xff]
      %v466 = vld [vmem:[#allocation11 + $0x58] sm:$0xff]
      %v467 = vld [vmem:[#allocation11 + $0x60] sm:$0xff]
      %v468 = vld [vmem:[#allocation11 + $0x68] sm:$0xff]
      %v469 = vld [vmem:[#allocation11 + $0x70] sm:$0xff]
      %v470 = vld [vmem:[#allocation11 + $0x78] sm:$0xff]
      %v471 = vld [vmem:[%s7] sm:$0x1]
      %v473 = vlaneseq
      %v474 = vshrl.u32 %v473, 7
      %v475 = vsub.s32 0, %v474
      %v476 = vrot.slane %v471, %v475
      %478 = vmatprep.subr.mxu0 0.0
      %479 = vmatpush1.msra.mxu0 %v455
      %480 = vmatprep.subr.mxu0 0.0
      %481 = vmatpush1.msra.mxu0 %v456
      %482 = vmatprep.subr.mxu0 0.0
      %483 = vmatpush1.msra.mxu0 %v457
      %484 = vmatprep.subr.mxu0 0.0
      %485 = vmatpush1.msra.mxu0 %v458
      %486 = vmatprep.subr.mxu0 0.0
      %487 = vmatpush1.msra.mxu0 %v459
      %488 = vmatprep.subr.mxu0 0.0
      %489 = vmatpush1.msra.mxu0 %v460
      %490 = vmatprep.subr.mxu0 0.0
      %491 = vmatpush1.msra.mxu0 %v461
      %492 = vmatprep.subr.mxu0 0.0
      %493 = vmatpush1.msra.mxu0 %v462
      %494 = vmatprep.subr.mxu0 0.0
      %495 = vmatpush1.msra.mxu0 %v463
      %496 = vmatprep.subr.mxu0 0.0
      %497 = vmatpush1.msra.mxu0 %v464
      %498 = vmatprep.subr.mxu0 0.0
      %499 = vmatpush1.msra.mxu0 %v465
      %500 = vmatprep.subr.mxu0 0.0
      %501 = vmatpush1.msra.mxu0 %v466
      %502 = vmatprep.subr.mxu0 0.0
      %503 = vmatpush1.msra.mxu0 %v467
      %504 = vmatprep.subr.mxu0 0.0
      %505 = vmatpush1.msra.mxu0 %v468
      %506 = vmatprep.subr.mxu0 0.0
      %507 = vmatpush1.msra.mxu0 %v469
      %508 = vmatprep.subr.mxu0 0.0
      %509 = vmatpush1.msra.mxu0 %v470
      %510 = vmatprep.subr.mxu0 0.0
      %511 = vmatpush1.msra.mxu0 0.0
      %512 = vmatprep.subr.mxu0 0.0
      %513 = vmatpush1.msra.mxu0 0.0
      %514 = vmatprep.subr.mxu0 0.0
      %515 = vmatpush1.msra.mxu0 0.0
      %516 = vmatprep.subr.mxu0 0.0
      %517 = vmatpush1.msra.mxu0 0.0
      %518 = vmatprep.subr.mxu0 0.0
      %519 = vmatpush1.msra.mxu0 0.0
      %520 = vmatprep.subr.mxu0 0.0
      %521 = vmatpush1.msra.mxu0 0.0
      %522 = vmatprep.subr.mxu0 0.0
      %523 = vmatpush1.msra.mxu0 0.0
      %524 = vmatprep.subr.mxu0 0.0
      %525 = vmatpush1.msra.mxu0 0.0
      %526 = vmatprep.subr.mxu0 0.0
      %527 = vmatpush1.msra.mxu0 0.0
      %528 = vmatprep.subr.mxu0 0.0
      %529 = vmatpush1.msra.mxu0 0.0
      %530 = vmatprep.subr.mxu0 0.0
      %531 = vmatpush1.msra.mxu0 0.0
      %532 = vmatprep.subr.mxu0 0.0
      %533 = vmatpush1.msra.mxu0 0.0
      %534 = vmatprep.subr.mxu0 0.0
      %535 = vmatpush1.msra.mxu0 0.0
      %536 = vmatprep.subr.mxu0 0.0
      %537 = vmatpush1.msra.mxu0 0.0
      %538 = vmatprep.subr.mxu0 0.0
      %539 = vmatpush1.msra.mxu0 0.0
      %540 = vmatprep.subr.mxu0 0.0
      %541 = vmatpush1.msra.mxu0 0.0
      %542 = vmatprep.mubr.f32.mxu0 0.0
      %543 = vmatmul.mubr.f32.gmra.mrb[0].mxu0 %v454
      %v544 = vpop.f32.mrb[0].mxu0
      %v545 = vadd.f32 %v476, %v544
      %v546 = vpop.f32.mrb[0].mxu0
      %547 = vdwg.mxu0
      %vm548 = vcmp.gt.f32.partialorder %v545, 0.0
      %v549 = vmul.f32 %v545, 1.442695
      %v550 = vpow.pop %v549
      %v551 = vsub.f32 %v550, 1.0
      %v552 = vmul.f32 %v551, 1.6732632
      %v553 = vsel %vm548, %v545, %v552
      %v554 = vmul.f32 %v553, 1.050701
      %555 = vst [vmem:[#allocation12] sm:$0xff] %v554
    $region61: #{tpu_custom_call.1} parent=1 // pred_fallthru
      _
    // Predicated region
    $region62: #{tpu_custom_call.1} parent=1 // pred_check
      _
    $region63: #{tpu_custom_call.1} parent=1 // pred_check_branch
      %557 = sbr.rel (0) target = $region65
    $region64: #{tpu_custom_call.1} parent=1 // pred_region
      %s559 = ssub.s32 128, 128
      %560 = vsyncadd [#allocation5], %s559
      %s562 = sshll.u32 [#allocation12], 4
      %s563 = int_to_ptr.vmem [resolvable:$true] %s562
      %565 = dma.vmem_to_hbm [thread:$0]  %s563, 128, %s8, [#allocation5]
    $region65: #{tpu_custom_call.1} parent=1 // pred_fallthru
      _
    // Predicated region
    $region66: #{tpu_custom_call.1} parent=1 // pred_check
      _
    $region67: #{tpu_custom_call.1} parent=1 // pred_check_branch
      %567 = sbr.rel (0) target = $region69
    $region68: #{tpu_custom_call.1} parent=1 // pred_region
      %568 = dma.done [#allocation5], 128
    $region69: #{tpu_custom_call.1} parent=1 // pred_fallthru
      _
    %569 = vsyncpa [#allocation4], 1
    %570 = vsyncpa [#allocation7], 1
    %571 = vsyncpa [#allocation10], 1
    %572 = vsyncpa [#allocation5], 1

</llo_original>
